<compile_context>
chip_gen: v7x
topology: tpu7x:2x2x1
jax: 0.10.0
libtpu: 0.0.40
codegen_flags: <defaults>
</compile_context>

<pallas_src>
import functools
import math

import jax
import jax.numpy as jnp
from jax.experimental import pallas as pl
from jax.experimental.pallas import tpu as pltpu


# --------------------------------------------------------------------------- kernel

def _bi_projection_kernel(
    x_l_cc_ref, x_r_cc_ref, x_l_mlo_ref, x_r_mlo_ref,
    w1_ref, b1_ref, w2_ref, b2_ref,
    out_ref,
    sum_ref, max_ref,
    *, hw, inv_hw, ragged,
):
    """One grid step: accumulate pooled stats for one batch element over one
    spatial tile; on the last tile run the shared MLP + sigmoid.

    x_*_ref : (1, C, tile) VMEM blocks of the NCHW inputs viewed as (B, C, HW)
    w1_ref  : (C, 4C), b1_ref: (C, 1), w2_ref: (C, C), b2_ref: (C, 1)   [VMEM]
    out_ref : (1, C, 2) -- column 0 = left sigmoid gate, column 1 = right.
    sum_ref : (C, 4) running sums,  columns [l_cc, r_cc, l_mlo, r_mlo]
    max_ref : (C, 4) running maxes, columns [l_cc, r_cc, l_mlo, r_mlo]
    """
    t = pl.program_id(1)
    num_t = pl.num_programs(1)
    f32 = jnp.float32
    _, c_dim, tile = x_l_cc_ref.shape

    @pl.when(t == 0)
    def _init():
        sum_ref[...] = jnp.zeros(sum_ref.shape, sum_ref.dtype)
        max_ref[...] = jnp.full(max_ref.shape, -jnp.inf, max_ref.dtype)

    if ragged:
        # Last tile extends past H*W; mask the invalid lanes (their VMEM content is
        # undefined): 0 for the sum, -inf for the max.
        pos = t * tile + jax.lax.broadcasted_iota(jnp.int32, (c_dim, tile), 1)
        valid = pos < hw

    s_cols = []
    m_cols = []
    for x_ref in (x_l_cc_ref, x_r_cc_ref, x_l_mlo_ref, x_r_mlo_ref):
        x = x_ref[0]                                   # (C, tile), input dtype
        if ragged:
            xs = jnp.where(valid, x, jnp.zeros((), x.dtype))
            xm = jnp.where(valid, x, jnp.full((), -jnp.inf, x.dtype))
        else:
            xs = xm = x
        # Sum accumulates in f32; max is exact in the native dtype, cast only the result.
        s_cols.append(jnp.sum(xs.astype(f32), axis=-1, keepdims=True))   # (C, 1)
        m_cols.append(jnp.max(xm, axis=-1, keepdims=True).astype(f32))   # (C, 1)

    # Single merged read-modify-write per statistic per tile.
    sum_ref[...] = sum_ref[...] + jnp.concatenate(s_cols, axis=1)        # (C, 4)
    max_ref[...] = jnp.maximum(max_ref[...], jnp.concatenate(m_cols, axis=1))

    @pl.when(t == num_t - 1)
    def _finish():
        s = sum_ref[...] * inv_hw          # (C, 4): mean, cols [l_cc, r_cc, l_mlo, r_mlo]
        m = max_ref[...]                   # (C, 4): max
        # flat^T, rows ordered as torch.cat((avg_cc, max_cc, avg_mlo, max_mlo), 1),
        # columns [left, right].
        flat_t = jnp.concatenate(
            [s[:, 0:2], m[:, 0:2], s[:, 2:4], m[:, 2:4]], axis=0)        # (4C, 2)
        h = jnp.dot(w1_ref[...], flat_t,
                    preferred_element_type=f32,
                    precision=jax.lax.Precision.HIGHEST) + b1_ref[...]   # (C, 2)
        h = jnp.maximum(h, 0.0)                                          # ReLU
        o = jnp.dot(w2_ref[...], h,
                    preferred_element_type=f32,
                    precision=jax.lax.Precision.HIGHEST) + b2_ref[...]   # (C, 2)
        out_ref[0] = jax.nn.sigmoid(o).astype(out_ref.dtype)


# --------------------------------------------------------------------------- planning

_MAX_TILE_LANES = 8192


def _pick_tile(hw, lanes_budget, max_tile=_MAX_TILE_LANES):
    """Spatial tile width (lanes). Always 128-aligned (or the full extent when
    hw <= 128), never wider than the array, prefers an exact divisor of hw."""
    if hw <= 128:
        return hw                                        # single full-extent tile
    aligned_hw = (hw // 128) * 128                       # keep block <= array extent
    tile = min(lanes_budget, max_tile, aligned_hw)
    tile = max(128, (tile // 128) * 128)
    if hw % tile != 0 and hw % 128 == 0:
        # Prefer a 128-aligned exact divisor close to the budget (no ragged tail),
        # but never shrink below half the budgeted tile.
        t = tile
        while t >= 128 and hw % t != 0:
            t -= 128
        if t >= max(128, tile // 2):
            tile = t
    return tile


def _vmem_plan(hw, c, in_dtype):
    """Pick (tile, vmem_limit_bytes) from the real input dtype and VMEM capacity,
    accounting for the f32 weights, accumulators and output blocks."""
    elem = jnp.dtype(in_dtype).itemsize
    try:
        cap = int(getattr(pltpu.get_tpu_info(), "vmem_capacity_bytes", 128 * 2**20))
    except Exception:                                    # be conservative off-device
        cap = 64 * 2**20
    base_limit = min((cap * 3) // 4, 96 * 2**20)

    c_pad = ((c + 7) // 8) * 8
    weight_bytes = 2 * 4 * (c * 4 * c + c * c + 2 * c)   # f32, assume double-buffered
    acc_bytes = 2 * c_pad * 128 * 4                      # two (C,4) f32 scratches (lane-padded)
    out_bytes = 2 * c_pad * 128 * 4                      # (1,C,2) out block, double-buffered
    slack = 2 * 2**20                                    # compiler internal scratch, misc

    avail = base_limit - weight_bytes - acc_bytes - out_bytes - slack
    per_input = max(avail // (4 * 2), c_pad * 128 * elem)    # 4 inputs x 2 buffers
    lanes_budget = max(128, per_input // (c_pad * elem))

    tile = _pick_tile(hw, lanes_budget)
    tile_pad = ((tile + 127) // 128) * 128
    need = (weight_bytes + acc_bytes + out_bytes + slack
            + 4 * 2 * c_pad * tile_pad * elem)
    vmem_limit = int(min(cap, max(base_limit, need)))
    return tile, vmem_limit


# --------------------------------------------------------------------------- wrappers

def bi_projection_attention_gates(x_l_cc, x_r_cc, x_l_mlo, x_r_mlo, w1, b1, w2, b2):
    """Returns (sig_l, sig_r), each (B, C) float32 -- the per-channel sigmoid gates.

    Preferred entry point: the PyTorch module's trailing .expand() is a zero-copy view,
    so consumers should multiply these gates into their feature maps directly instead of
    materializing the broadcast (B, C, H, W) tensors.
    """
    B, C, H, W = x_l_cc.shape
    hw = H * W
    tile, vmem_limit = _vmem_plan(hw, C, x_l_cc.dtype)
    num_t = pl.cdiv(hw, tile)
    ragged = (num_t * tile != hw)

    xs = [x.reshape(B, C, hw) for x in (x_l_cc, x_r_cc, x_l_mlo, x_r_mlo)]
    w1f = w1.astype(jnp.float32)                 # (C, 4C), torch Linear layout
    w2f = w2.astype(jnp.float32)                 # (C, C)
    b1c = b1.astype(jnp.float32).reshape(C, 1)
    b2c = b2.astype(jnp.float32).reshape(C, 1)

    x_spec = pl.BlockSpec((1, C, tile), lambda b, t: (b, 0, t))

    def _full(shape):
        return pl.BlockSpec(shape, lambda b, t: (0, 0))

    sig = pl.pallas_call(
        functools.partial(_bi_projection_kernel,
                          hw=hw, inv_hw=1.0 / hw, ragged=ragged),
        out_shape=jax.ShapeDtypeStruct((B, C, 2), jnp.float32),
        grid=(B, num_t),
        in_specs=[x_spec, x_spec, x_spec, x_spec,
                  _full((C, 4 * C)), _full((C, 1)),
                  _full((C, C)), _full((C, 1))],
        out_specs=pl.BlockSpec((1, C, 2), lambda b, t: (b, 0, 0)),
        scratch_shapes=[pltpu.VMEM((C, 4), jnp.float32),
                        pltpu.VMEM((C, 4), jnp.float32)],
        compiler_params=pltpu.CompilerParams(
            dimension_semantics=("parallel", "arbitrary"),
            vmem_limit_bytes=vmem_limit,
        ),
    )(*xs, w1f, b1c, w2f, b2c)

    return sig[:, :, 0], sig[:, :, 1]


def bi_projection_attention(x_l_cc, x_r_cc, x_l_mlo, x_r_mlo, w1, b1, w2, b2):
    """JAX wrapper matching Bi_projection_attention_module.forward exactly.

    Returns (output_l, output_r), each (B, C, H, W): the per-channel sigmoid gates
    broadcast over the spatial dims (PyTorch .expand()).  Note: returning these from a
    jit materializes the broadcast; prefer bi_projection_attention_gates when fusing
    into a downstream op.
    """
    B, C, H, W = x_l_cc.shape
    sig_l, sig_r = bi_projection_attention_gates(
        x_l_cc, x_r_cc, x_l_mlo, x_r_mlo, w1, b1, w2, b2)
    out_l = jnp.broadcast_to(sig_l[:, :, None, None], (B, C, H, W))
    out_r = jnp.broadcast_to(sig_r[:, :, None, None], (B, C, H, W))
    return out_l, out_r


# --------------------------------------------------------------------------- reference

def _reference(x_l_cc, x_r_cc, x_l_mlo, x_r_mlo, w1, b1, w2, b2):
    """Pure-JAX reference for correctness checking."""
    B, C, H, W = x_l_cc.shape

    def pooled(a, b):
        return jnp.concatenate(
            [jnp.mean(a, axis=(2, 3)), jnp.max(a, axis=(2, 3)),
             jnp.mean(b, axis=(2, 3)), jnp.max(b, axis=(2, 3))], axis=1)

    def fc(x):
        h = jnp.maximum(
            jnp.dot(x, w1.T, precision=jax.lax.Precision.HIGHEST) + b1, 0.0)
        o = jnp.dot(h, w2.T, precision=jax.lax.Precision.HIGHEST) + b2
        return jax.nn.sigmoid(o)

    sig_l = fc(pooled(x_l_cc, x_l_mlo))
    sig_r = fc(pooled(x_r_cc, x_r_mlo))
    out_l = jnp.broadcast_to(sig_l[:, :, None, None], (B, C, H, W))
    out_r = jnp.broadcast_to(sig_r[:, :, None, None], (B, C, H, W))
    return out_l, out_r


# --------------------------------------------------------------------------- test

if __name__ == "__main__":
    key = jax.random.PRNGKey(0)
    B, C, H, W = 2, 4, 16, 16
    ks = jax.random.split(key, 8)

    x_l_cc = jax.random.normal(ks[0], (B, C, H, W), jnp.float32)
    x_r_cc = jax.random.normal(ks[1], (B, C, H, W), jnp.float32)
    x_l_mlo = jax.random.normal(ks[2], (B, C, H, W), jnp.float32)
    x_r_mlo = jax.random.normal(ks[3], (B, C, H, W), jnp.float32)

    # nn.Linear default init bounds: U(-1/sqrt(fan_in), 1/sqrt(fan_in)).
    bound1 = 1.0 / math.sqrt(4 * C)
    w1 = jax.random.uniform(ks[4], (C, 4 * C), jnp.float32, -bound1, bound1)
    b1 = jax.random.uniform(ks[5], (C,), jnp.float32, -bound1, bound1)
    bound2 = 1.0 / math.sqrt(C)
    w2 = jax.random.uniform(ks[6], (C, C), jnp.float32, -bound2, bound2)
    b2 = jax.random.uniform(ks[7], (C,), jnp.float32, -bound2, bound2)

    out_l, out_r = bi_projection_attention(
        x_l_cc, x_r_cc, x_l_mlo, x_r_mlo, w1, b1, w2, b2)
    jax.block_until_ready((out_l, out_r))

    ref_l, ref_r = _reference(x_l_cc, x_r_cc, x_l_mlo, x_r_mlo, w1, b1, w2, b2)
    assert out_l.shape == (B, C, H, W) and out_r.shape == (B, C, H, W)
    assert jnp.allclose(out_l, ref_l, atol=1e-4, rtol=1e-4), "left gate mismatch"
    assert jnp.allclose(out_r, ref_r, atol=1e-4, rtol=1e-4), "right gate mismatch"

    print("KERNEL_OK")
</pallas_src>

<mosaic_0001>
module attributes {stable_mosaic.version = 11 : i64} {
  func.func @_bi_projection_kernel(%arg0: i32, %arg1: i32, %arg2: memref<1x4x256xf32, #tpu.memory_space<vmem>>, %arg3: memref<1x4x256xf32, #tpu.memory_space<vmem>>, %arg4: memref<1x4x256xf32, #tpu.memory_space<vmem>>, %arg5: memref<1x4x256xf32, #tpu.memory_space<vmem>>, %arg6: memref<4x16xf32, #tpu.memory_space<vmem>>, %arg7: memref<4x1xf32, #tpu.memory_space<vmem>>, %arg8: memref<4x4xf32, #tpu.memory_space<vmem>>, %arg9: memref<4x1xf32, #tpu.memory_space<vmem>>, %arg10: memref<1x4x2xf32, #tpu.memory_space<vmem>>, %arg11: memref<4x4xf32, #tpu.memory_space<vmem>>, %arg12: memref<4x4xf32, #tpu.memory_space<vmem>>) attributes {dimension_semantics = [#tpu.dimension_semantics<parallel>, #tpu.dimension_semantics<arbitrary>], iteration_bounds = array<i64: 2, 1>, scalar_prefetch = 0 : i64, scratch_operands = 2 : i64, tpu.core_type = #tpu.core_type<tc>, window_params = [{transform_indices = @transform_0, window_bounds = array<i64: 1, 4, 256>}, {transform_indices = @transform_1, window_bounds = array<i64: 1, 4, 256>}, {transform_indices = @transform_2, window_bounds = array<i64: 1, 4, 256>}, {transform_indices = @transform_3, window_bounds = array<i64: 1, 4, 256>}, {pipeline_mode = #tpu.pipeline_mode<synchronous>, transform_indices = @transform_4, window_bounds = array<i64: 4, 16>}, {pipeline_mode = #tpu.pipeline_mode<synchronous>, transform_indices = @transform_5, window_bounds = array<i64: 4, 1>}, {pipeline_mode = #tpu.pipeline_mode<synchronous>, transform_indices = @transform_6, window_bounds = array<i64: 4, 4>}, {pipeline_mode = #tpu.pipeline_mode<synchronous>, transform_indices = @transform_7, window_bounds = array<i64: 4, 1>}, {transform_indices = @transform_8, window_bounds = array<i64: 1, 4, 2>}]} {
    %c0_i32 = arith.constant 0 : i32
    %0 = arith.cmpi eq, %arg1, %c0_i32 : i32
    %1 = arith.extui %0 : i1 to i32
    %c0_i32_0 = arith.constant 0 : i32
    %2 = arith.cmpi ne, %1, %c0_i32_0 : i32
    scf.if %2 {
      %cst_29 = arith.constant 0.000000e+00 : f32
      %38 = vector.broadcast %cst_29 : f32 to vector<4x4xf32>
      %c0_30 = arith.constant 0 : index
      %c0_31 = arith.constant 0 : index
      %39 = vector.load %arg11[%c0_30, %c0_31] : memref<4x4xf32, #tpu.memory_space<vmem>>, vector<4x4xf32>
      tpu.vector_store %arg11[%c0_30, %c0_31], %38 {strides = array<i32>} : memref<4x4xf32, #tpu.memory_space<vmem>>, vector<4x4xf32>,
      %cst_32 = arith.constant 0xFF800000 : f32
      %40 = vector.broadcast %cst_32 : f32 to vector<4x4xf32>
      %c0_33 = arith.constant 0 : index
      %c0_34 = arith.constant 0 : index
      %41 = vector.load %arg12[%c0_33, %c0_34] : memref<4x4xf32, #tpu.memory_space<vmem>>, vector<4x4xf32>
      tpu.vector_store %arg12[%c0_33, %c0_34], %40 {strides = array<i32>} : memref<4x4xf32, #tpu.memory_space<vmem>>, vector<4x4xf32>,
    } else {
    }
    %c0 = arith.constant 0 : index
    %c0_1 = arith.constant 0 : index
    %c0_2 = arith.constant 0 : index
    %3 = vector.load %arg2[%c0, %c0_1, %c0_2] : memref<1x4x256xf32, #tpu.memory_space<vmem>>, vector<1x4x256xf32>
    %4 = vector.shape_cast %3 : vector<1x4x256xf32> to vector<4x256xf32>
    %cst = arith.constant dense<0.000000e+00> : vector<4xf32>
    %5 = vector.multi_reduction <add>, %4, %cst [1] : vector<4x256xf32> to vector<4xf32>
    %6 = vector.shape_cast %5 : vector<4xf32> to vector<4x1xf32>
    %cst_3 = arith.constant dense<0xFF800000> : vector<4xf32>
    %7 = vector.multi_reduction <maximumf>, %4, %cst_3 [1] : vector<4x256xf32> to vector<4xf32>
    %8 = vector.shape_cast %7 : vector<4xf32> to vector<4x1xf32>
    %c0_4 = arith.constant 0 : index
    %c0_5 = arith.constant 0 : index
    %c0_6 = arith.constant 0 : index
    %9 = vector.load %arg3[%c0_4, %c0_5, %c0_6] : memref<1x4x256xf32, #tpu.memory_space<vmem>>, vector<1x4x256xf32>
    %10 = vector.shape_cast %9 : vector<1x4x256xf32> to vector<4x256xf32>
    %cst_7 = arith.constant dense<0.000000e+00> : vector<4xf32>
    %11 = vector.multi_reduction <add>, %10, %cst_7 [1] : vector<4x256xf32> to vector<4xf32>
    %12 = vector.shape_cast %11 : vector<4xf32> to vector<4x1xf32>
    %cst_8 = arith.constant dense<0xFF800000> : vector<4xf32>
    %13 = vector.multi_reduction <maximumf>, %10, %cst_8 [1] : vector<4x256xf32> to vector<4xf32>
    %14 = vector.shape_cast %13 : vector<4xf32> to vector<4x1xf32>
    %c0_9 = arith.constant 0 : index
    %c0_10 = arith.constant 0 : index
    %c0_11 = arith.constant 0 : index
    %15 = vector.load %arg4[%c0_9, %c0_10, %c0_11] : memref<1x4x256xf32, #tpu.memory_space<vmem>>, vector<1x4x256xf32>
    %16 = vector.shape_cast %15 : vector<1x4x256xf32> to vector<4x256xf32>
    %cst_12 = arith.constant dense<0.000000e+00> : vector<4xf32>
    %17 = vector.multi_reduction <add>, %16, %cst_12 [1] : vector<4x256xf32> to vector<4xf32>
    %18 = vector.shape_cast %17 : vector<4xf32> to vector<4x1xf32>
    %cst_13 = arith.constant dense<0xFF800000> : vector<4xf32>
    %19 = vector.multi_reduction <maximumf>, %16, %cst_13 [1] : vector<4x256xf32> to vector<4xf32>
    %20 = vector.shape_cast %19 : vector<4xf32> to vector<4x1xf32>
    %c0_14 = arith.constant 0 : index
    %c0_15 = arith.constant 0 : index
    %c0_16 = arith.constant 0 : index
    %21 = vector.load %arg5[%c0_14, %c0_15, %c0_16] : memref<1x4x256xf32, #tpu.memory_space<vmem>>, vector<1x4x256xf32>
    %22 = vector.shape_cast %21 : vector<1x4x256xf32> to vector<4x256xf32>
    %cst_17 = arith.constant dense<0.000000e+00> : vector<4xf32>
    %23 = vector.multi_reduction <add>, %22, %cst_17 [1] : vector<4x256xf32> to vector<4xf32>
    %24 = vector.shape_cast %23 : vector<4xf32> to vector<4x1xf32>
    %cst_18 = arith.constant dense<0xFF800000> : vector<4xf32>
    %25 = vector.multi_reduction <maximumf>, %22, %cst_18 [1] : vector<4x256xf32> to vector<4xf32>
    %26 = vector.shape_cast %25 : vector<4xf32> to vector<4x1xf32>
    %c0_19 = arith.constant 0 : index
    %c0_20 = arith.constant 0 : index
    %27 = vector.load %arg11[%c0_19, %c0_20] : memref<4x4xf32, #tpu.memory_space<vmem>>, vector<4x4xf32>
    %28 = tpu.concatenate %6, %12, %18, %24 in 1 : vector<4x1xf32>, vector<4x1xf32>, vector<4x1xf32>, vector<4x1xf32> -> vector<4x4xf32>
    %29 = arith.addf %27, %28 : vector<4x4xf32>
    %c0_21 = arith.constant 0 : index
    %c0_22 = arith.constant 0 : index
    %30 = vector.load %arg11[%c0_21, %c0_22] : memref<4x4xf32, #tpu.memory_space<vmem>>, vector<4x4xf32>
    tpu.vector_store %arg11[%c0_21, %c0_22], %29 {strides = array<i32>} : memref<4x4xf32, #tpu.memory_space<vmem>>, vector<4x4xf32>,
    %c0_23 = arith.constant 0 : index
    %c0_24 = arith.constant 0 : index
    %31 = vector.load %arg12[%c0_23, %c0_24] : memref<4x4xf32, #tpu.memory_space<vmem>>, vector<4x4xf32>
    %32 = tpu.concatenate %8, %14, %20, %26 in 1 : vector<4x1xf32>, vector<4x1xf32>, vector<4x1xf32>, vector<4x1xf32> -> vector<4x4xf32>
    %33 = arith.maximumf %31, %32 : vector<4x4xf32>
    %c0_25 = arith.constant 0 : index
    %c0_26 = arith.constant 0 : index
    %34 = vector.load %arg12[%c0_25, %c0_26] : memref<4x4xf32, #tpu.memory_space<vmem>>, vector<4x4xf32>
    tpu.vector_store %arg12[%c0_25, %c0_26], %33 {strides = array<i32>} : memref<4x4xf32, #tpu.memory_space<vmem>>, vector<4x4xf32>,
    %c0_i32_27 = arith.constant 0 : i32
    %35 = arith.cmpi eq, %arg1, %c0_i32_27 : i32
    %36 = arith.extui %35 : i1 to i32
    %c0_i32_28 = arith.constant 0 : i32
    %37 = arith.cmpi ne, %36, %c0_i32_28 : i32
    scf.if %37 {
      %c0_29 = arith.constant 0 : index
      %c0_30 = arith.constant 0 : index
      %38 = vector.load %arg11[%c0_29, %c0_30] : memref<4x4xf32, #tpu.memory_space<vmem>>, vector<4x4xf32>
      %cst_31 = arith.constant 3.906250e-03 : f32
      %39 = vector.broadcast %cst_31 : f32 to vector<4x4xf32>
      %40 = arith.mulf %38, %39 : vector<4x4xf32>
      %c0_32 = arith.constant 0 : index
      %c0_33 = arith.constant 0 : index
      %41 = vector.load %arg12[%c0_32, %c0_33] : memref<4x4xf32, #tpu.memory_space<vmem>>, vector<4x4xf32>
      %42 = vector.extract_strided_slice %40 {offsets = [0, 0], sizes = [4, 2], strides = [1, 1]} : vector<4x4xf32> to vector<4x2xf32>
      %43 = vector.extract_strided_slice %41 {offsets = [0, 0], sizes = [4, 2], strides = [1, 1]} : vector<4x4xf32> to vector<4x2xf32>
      %44 = vector.extract_strided_slice %40 {offsets = [0, 2], sizes = [4, 2], strides = [1, 1]} : vector<4x4xf32> to vector<4x2xf32>
      %45 = vector.extract_strided_slice %41 {offsets = [0, 2], sizes = [4, 2], strides = [1, 1]} : vector<4x4xf32> to vector<4x2xf32>
      %46 = tpu.concatenate %42, %43, %44, %45 in 0 : vector<4x2xf32>, vector<4x2xf32>, vector<4x2xf32>, vector<4x2xf32> -> vector<16x2xf32>
      %c0_34 = arith.constant 0 : index
      %c0_35 = arith.constant 0 : index
      %47 = vector.load %arg6[%c0_34, %c0_35] : memref<4x16xf32, #tpu.memory_space<vmem>>, vector<4x16xf32>
      %cst_36 = arith.constant dense<0.000000e+00> : vector<4x2xf32>
      %48 = tpu.matmul %47, %46, %cst_36 {dimension_numbers = #tpu.dot_dimension_numbers<[1], [0], [0], [1], [0, 0, 1, 1], [], []>, precision = #tpu.contract_precision<fp32>} : vector<4x16xf32>, vector<16x2xf32>, vector<4x2xf32> -> vector<4x2xf32>
      %c0_37 = arith.constant 0 : index
      %c0_38 = arith.constant 0 : index
      %49 = vector.load %arg7[%c0_37, %c0_38] : memref<4x1xf32, #tpu.memory_space<vmem>>, vector<4x1xf32>
      %50 = vector.broadcast %49 : vector<4x1xf32> to vector<4x2xf32>
      %51 = arith.addf %48, %50 : vector<4x2xf32>
      %cst_39 = arith.constant 0.000000e+00 : f32
      %52 = vector.broadcast %cst_39 : f32 to vector<4x2xf32>
      %53 = arith.maximumf %51, %52 : vector<4x2xf32>
      %c0_40 = arith.constant 0 : index
      %c0_41 = arith.constant 0 : index
      %54 = vector.load %arg8[%c0_40, %c0_41] : memref<4x4xf32, #tpu.memory_space<vmem>>, vector<4x4xf32>
      %cst_42 = arith.constant dense<0.000000e+00> : vector<4x2xf32>
      %55 = tpu.matmul %54, %53, %cst_42 {dimension_numbers = #tpu.dot_dimension_numbers<[1], [0], [0], [1], [0, 0, 1, 1], [], []>, precision = #tpu.contract_precision<fp32>} : vector<4x4xf32>, vector<4x2xf32>, vector<4x2xf32> -> vector<4x2xf32>
      %c0_43 = arith.constant 0 : index
      %c0_44 = arith.constant 0 : index
      %56 = vector.load %arg9[%c0_43, %c0_44] : memref<4x1xf32, #tpu.memory_space<vmem>>, vector<4x1xf32>
      %57 = vector.broadcast %56 : vector<4x1xf32> to vector<4x2xf32>
      %58 = arith.addf %55, %57 : vector<4x2xf32>
      %59 = arith.negf %58 : vector<4x2xf32>
      %60 = math.exp %59 : vector<4x2xf32>
      %cst_45 = arith.constant 1.000000e+00 : f32
      %61 = vector.broadcast %cst_45 : f32 to vector<4x2xf32>
      %62 = arith.addf %61, %60 : vector<4x2xf32>
      %63 = arith.divf %61, %62 : vector<4x2xf32>
      %c0_46 = arith.constant 0 : index
      %c0_47 = arith.constant 0 : index
      %c0_48 = arith.constant 0 : index
      %64 = vector.load %arg10[%c0_46, %c0_47, %c0_48] : memref<1x4x2xf32, #tpu.memory_space<vmem>>, vector<1x4x2xf32>
      %65 = vector.shape_cast %64 : vector<1x4x2xf32> to vector<4x2xf32>
      %66 = vector.shape_cast %63 : vector<4x2xf32> to vector<1x4x2xf32>
      tpu.vector_store %arg10[%c0_46, %c0_47, %c0_48], %66 {strides = array<i32>} : memref<1x4x2xf32, #tpu.memory_space<vmem>>, vector<1x4x2xf32>,
    } else {
    }
    return
  }
  func.func @transform_0(%arg0: i32, %arg1: i32) -> (i32, i32, i32) {
    %c0_i32 = arith.constant 0 : i32
    %c0_i32_0 = arith.constant 0 : i32
    return %arg0, %c0_i32, %arg1 : i32, i32, i32
  }
  func.func @transform_1(%arg0: i32, %arg1: i32) -> (i32, i32, i32) {
    %c0_i32 = arith.constant 0 : i32
    %c0_i32_0 = arith.constant 0 : i32
    return %arg0, %c0_i32, %arg1 : i32, i32, i32
  }
  func.func @transform_2(%arg0: i32, %arg1: i32) -> (i32, i32, i32) {
    %c0_i32 = arith.constant 0 : i32
    %c0_i32_0 = arith.constant 0 : i32
    return %arg0, %c0_i32, %arg1 : i32, i32, i32
  }
  func.func @transform_3(%arg0: i32, %arg1: i32) -> (i32, i32, i32) {
    %c0_i32 = arith.constant 0 : i32
    %c0_i32_0 = arith.constant 0 : i32
    return %arg0, %c0_i32, %arg1 : i32, i32, i32
  }
  func.func @transform_4(%arg0: i32, %arg1: i32) -> (i32, i32) {
    %c0_i32 = arith.constant 0 : i32
    %c0_i32_0 = arith.constant 0 : i32
    %c0_i32_1 = arith.constant 0 : i32
    return %c0_i32, %c0_i32_0 : i32, i32
  }
  func.func @transform_5(%arg0: i32, %arg1: i32) -> (i32, i32) {
    %c0_i32 = arith.constant 0 : i32
    %c0_i32_0 = arith.constant 0 : i32
    %c0_i32_1 = arith.constant 0 : i32
    return %c0_i32, %c0_i32_0 : i32, i32
  }
  func.func @transform_6(%arg0: i32, %arg1: i32) -> (i32, i32) {
    %c0_i32 = arith.constant 0 : i32
    %c0_i32_0 = arith.constant 0 : i32
    %c0_i32_1 = arith.constant 0 : i32
    return %c0_i32, %c0_i32_0 : i32, i32
  }
  func.func @transform_7(%arg0: i32, %arg1: i32) -> (i32, i32) {
    %c0_i32 = arith.constant 0 : i32
    %c0_i32_0 = arith.constant 0 : i32
    %c0_i32_1 = arith.constant 0 : i32
    return %c0_i32, %c0_i32_0 : i32, i32
  }
  func.func @transform_8(%arg0: i32, %arg1: i32) -> (i32, i32, i32) {
    %c0_i32 = arith.constant 0 : i32
    %c0_i32_0 = arith.constant 0 : i32
    %c0_i32_1 = arith.constant 0 : i32
    return %arg0, %c0_i32, %c0_i32_0 : i32, i32, i32
  }
}

</mosaic_0001>

<llo_original>
// kernel: tpu_custom_call.1
$region0: #{tpu_custom_call.1}
  #allocation0 [shape = 'u32[]', space=smem, size = 0x4, offset = 0x4, fixed_abs, tag = 'smem constant byte address 0x4 - core index']
  #allocation1 [shape = 'u32[144,128]{1,0:T(1,128)}', space=vmem, size = 0x12000, scoped, tag = 'internal scratch']
  #allocation2 [shape = 'f32[4,4]{1,0:T(4,128)}', space=vmem, size = 0x800, scoped, tag = 'scratch operand']
  #allocation3 [shape = 'f32[4,4]{1,0:T(4,128)}', space=vmem, size = 0x800, scoped, tag = 'scratch operand']
  %s0 = inlined_call_operand.hbm [shape: f32[2,4,256], index: 0, kind: input, shape index: {}]
  %s1 = inlined_call_operand.hbm [shape: f32[2,4,256], index: 1, kind: input, shape index: {}]
  %s2 = inlined_call_operand.vmem [shape: f32[2,4,256], index: 2, kind: input, shape index: {}]
  %s3 = inlined_call_operand.hbm [shape: f32[2,4,256], index: 3, kind: input, shape index: {}]
  %s4 = inlined_call_operand.vmem [shape: f32[4,16], index: 4, kind: input, shape index: {}]
  %s5 = inlined_call_operand.vmem [shape: f32[4,1], index: 5, kind: input, shape index: {}]
  %s6 = inlined_call_operand.vmem [shape: f32[4,4], index: 6, kind: input, shape index: {}]
  %s7 = inlined_call_operand.vmem [shape: f32[4,1], index: 7, kind: input, shape index: {}]
  %s8 = inlined_call_operand.vmem [shape: f32[2,4,2], index: 8, kind: output, shape index: {}]
  %s9 = sld [smem:[#allocation0]]
  $region85: #{tpu_custom_call.1} parent=0
    _
  %s11 = ssub.s32 1, %s9
  %s12 = scalar_select 0, %s11, %s9
  $region1: #{tpu_custom_call.1} parent=0
    #allocation4 [shape = 'u8[8192]{0}', space=vmem, size = 0x2000, scoped, tag = 'input window, operand 0']
    #allocation5 [shape = 's32[2]{0}', space=sflag, size = 0x8, scoped, tag = 'scoped memory for tpu_custom_call.1']
    #allocation6 [shape = 'u8[8192]{0}', space=vmem, size = 0x2000, scoped, tag = 'input window, operand 1']
    #allocation7 [shape = 's32[2]{0}', space=sflag, size = 0x8, scoped, tag = 'scoped memory for tpu_custom_call.1']
    #allocation8 [shape = 'u8[8192]{0}', space=vmem, size = 0x2000, scoped, tag = 'input window, operand 3']
    %13 = vsyncpa [#allocation5], 0
    %s14 = scalar_lea.sflag [#allocation5], 1
    %15 = vsyncpa %s14, 0
    %16 = vsyncpa [#allocation7], 0
    %s17 = scalar_lea.sflag [#allocation7], 1
    %18 = vsyncpa %s17, 0
    loop: start=0, step=1, limit=4
    $region2: #{tpu_custom_call.1} parent=1 // loop_pre_header
      _
    $region3: #{tpu_custom_call.1} parent=1 // loop_header
      %s20 = sphi 0, %s24
      %p21 = scmp.ge.s32.totalorder %s20, 4
      %s27 = sphi 0, %s39
      %s28 = sphi 0, %s35
      %s29 = sphi 0, %s27
      %s30 = sphi 0, %s28
      %s31 = sphi 0, %s29
      %s32 = sphi 0, %s30
      %s44 = sphi 0, %s46
      %s47 = sphi 0, %s44
      %s48 = sphi 0, %s47
      %s64 = sphi 0, %s48
      %s72 = sphi 0, %s74
      %s75 = sphi 0, %s72
      %s76 = sphi 0, %s75
      %s92 = sphi 0, %s76
      %s100 = sphi 0, %s102
      %s103 = sphi 0, %s100
      %s104 = sphi 0, %s103
      %s120 = sphi 0, %s104
      %s128 = sphi 0, %s130
      %s131 = sphi 0, %s128
      %s132 = sphi 0, %s131
      %s148 = sphi 0, %s132
      %s152 = sphi 0, %s152
      %s154 = sphi 0, %s152
      %s155 = sphi 0, %s154
      %s169 = sphi 0, %s155
      %s173 = sphi 0, %s173
      %s175 = sphi 0, %s173
      %s176 = sphi 0, %s175
      %s190 = sphi 0, %s176
      %s194 = sphi 0, %s194
      %s196 = sphi 0, %s194
      %s197 = sphi 0, %s196
      %s211 = sphi 0, %s197
      %s215 = sphi 0, %s215
      %s217 = sphi 0, %s215
      %s218 = sphi 0, %s217
      %s232 = sphi 0, %s218
      %s238 = sphi 0, %s240
      %s241 = sphi 0, %s238
      %s242 = sphi 0, %s241
      %s258 = sphi 0, %s242
    $region4: #{tpu_custom_call.1} parent=1 // loop_header_branch
      %23 = sbr.rel (%p21) target = $region8
    $region5: #{tpu_custom_call.1} parent=1 // loop_body
      %s25 = ssub.s32 %s20, 1
      %s26 = ssub.s32 %s20, 2
      %s33 = sadd.s32 1, %s28
      %p34 = scmp.ge.s32.totalorder %s33, 1
      %s35 = scalar_select %p34, 0, %s33
      %s36 = sadd.s32 1, %s27
      %s37 = scalar_select %p34, %s36, %s27
      %p38 = scmp.ge.s32.totalorder %s37, 2
      %s39 = scalar_select %p38, 0, %s37
      %s40 = ssub.s32 %s27, %s39
      %s41 = ssub.s32 %s28, %s35
      %s42 = sor.u32 %s40, %s41
      %p43 = scmp.eq.s32.totalorder %s42, 0
      %s45 = sadd.s32 %s44, 1
      %s46 = scalar_select %p43, %s44, %s45
      %p49 = pneg %p43
      %p50 = scmp.eq.s32.totalorder %s20, 1
      %p51 = por %p49, %p50
      %p52 = scmp.ne.s32.totalorder %s44, %s47
      %p53 = scmp.eq.s32.totalorder %s20, 0
      %p54 = por %p52, %p53
      %p55 = scmp.ne.s32.totalorder %s44, %s47
      %p56 = scmp.eq.s32.totalorder %s25, 1
      %p57 = por %p55, %p56
      %p58 = scmp.ne.s32.totalorder %s47, %s48
      %p59 = scmp.eq.s32.totalorder %s25, 0
      %p60 = por %p58, %p59
      %p61 = scmp.ne.s32.totalorder %s47, %s48
      %p62 = scmp.eq.s32.totalorder %s26, 1
      %p63 = por %p61, %p62
      %p65 = scmp.ne.s32.totalorder %s48, %s64
      %p66 = scmp.eq.s32.totalorder %s26, 0
      %p67 = por %p65, %p66
      %s68 = ssub.s32 %s27, %s39
      %s69 = ssub.s32 %s28, %s35
      %s70 = sor.u32 %s68, %s69
      %p71 = scmp.eq.s32.totalorder %s70, 0
      %s73 = sadd.s32 %s72, 1
      %s74 = scalar_select %p71, %s72, %s73
      %p77 = pneg %p71
      %p78 = scmp.eq.s32.totalorder %s20, 1
      %p79 = por %p77, %p78
      %p80 = scmp.ne.s32.totalorder %s72, %s75
      %p81 = scmp.eq.s32.totalorder %s20, 0
      %p82 = por %p80, %p81
      %p83 = scmp.ne.s32.totalorder %s72, %s75
      %p84 = scmp.eq.s32.totalorder %s25, 1
      %p85 = por %p83, %p84
      %p86 = scmp.ne.s32.totalorder %s75, %s76
      %p87 = scmp.eq.s32.totalorder %s25, 0
      %p88 = por %p86, %p87
      %p89 = scmp.ne.s32.totalorder %s75, %s76
      %p90 = scmp.eq.s32.totalorder %s26, 1
      %p91 = por %p89, %p90
      %p93 = scmp.ne.s32.totalorder %s76, %s92
      %p94 = scmp.eq.s32.totalorder %s26, 0
      %p95 = por %p93, %p94
      %s96 = ssub.s32 %s27, %s39
      %s97 = ssub.s32 %s28, %s35
      %s98 = sor.u32 %s96, %s97
      %p99 = scmp.eq.s32.totalorder %s98, 0
      %s101 = sadd.s32 %s100, 1
      %s102 = scalar_select %p99, %s100, %s101
      %p105 = pneg %p99
      %p106 = scmp.eq.s32.totalorder %s20, 1
      %p107 = por %p105, %p106
      %p108 = scmp.ne.s32.totalorder %s100, %s103
      %p109 = scmp.eq.s32.totalorder %s20, 0
      %p110 = por %p108, %p109
      %p111 = scmp.ne.s32.totalorder %s100, %s103
      %p112 = scmp.eq.s32.totalorder %s25, 1
      %p113 = por %p111, %p112
      %p114 = scmp.ne.s32.totalorder %s103, %s104
      %p115 = scmp.eq.s32.totalorder %s25, 0
      %p116 = por %p114, %p115
      %p117 = scmp.ne.s32.totalorder %s103, %s104
      %p118 = scmp.eq.s32.totalorder %s26, 1
      %p119 = por %p117, %p118
      %p121 = scmp.ne.s32.totalorder %s104, %s120
      %p122 = scmp.eq.s32.totalorder %s26, 0
      %p123 = por %p121, %p122
      %s124 = ssub.s32 %s27, %s39
      %s125 = ssub.s32 %s28, %s35
      %s126 = sor.u32 %s124, %s125
      %p127 = scmp.eq.s32.totalorder %s126, 0
      %s129 = sadd.s32 %s128, 1
      %s130 = scalar_select %p127, %s128, %s129
      %p133 = pneg %p127
      %p134 = scmp.eq.s32.totalorder %s20, 1
      %p135 = por %p133, %p134
      %p136 = scmp.ne.s32.totalorder %s128, %s131
      %p137 = scmp.eq.s32.totalorder %s20, 0
      %p138 = por %p136, %p137
      %p139 = scmp.ne.s32.totalorder %s128, %s131
      %p140 = scmp.eq.s32.totalorder %s25, 1
      %p141 = por %p139, %p140
      %p142 = scmp.ne.s32.totalorder %s131, %s132
      %p143 = scmp.eq.s32.totalorder %s25, 0
      %p144 = por %p142, %p143
      %p145 = scmp.ne.s32.totalorder %s131, %s132
      %p146 = scmp.eq.s32.totalorder %s26, 1
      %p147 = por %p145, %p146
      %p149 = scmp.ne.s32.totalorder %s132, %s148
      %p150 = scmp.eq.s32.totalorder %s26, 0
      %p151 = por %p149, %p150
      %s153 = sadd.s32 %s152, 1
      %p156 = scmp.eq.s32.totalorder %s20, 1
      %p157 = scmp.ne.s32.totalorder %s152, %s154
      %p158 = scmp.eq.s32.totalorder %s20, 0
      %p159 = por %p157, %p158
      %p160 = scmp.ne.s32.totalorder %s152, %s154
      %p161 = scmp.eq.s32.totalorder %s25, 1
      %p162 = por %p160, %p161
      %p163 = scmp.ne.s32.totalorder %s154, %s155
      %p164 = scmp.eq.s32.totalorder %s25, 0
      %p165 = por %p163, %p164
      %p166 = scmp.ne.s32.totalorder %s154, %s155
      %p167 = scmp.eq.s32.totalorder %s26, 1
      %p168 = por %p166, %p167
      %p170 = scmp.ne.s32.totalorder %s155, %s169
      %p171 = scmp.eq.s32.totalorder %s26, 0
      %p172 = por %p170, %p171
      %s174 = sadd.s32 %s173, 1
      %p177 = scmp.eq.s32.totalorder %s20, 1
      %p178 = scmp.ne.s32.totalorder %s173, %s175
      %p179 = scmp.eq.s32.totalorder %s20, 0
      %p180 = por %p178, %p179
      %p181 = scmp.ne.s32.totalorder %s173, %s175
      %p182 = scmp.eq.s32.totalorder %s25, 1
      %p183 = por %p181, %p182
      %p184 = scmp.ne.s32.totalorder %s175, %s176
      %p185 = scmp.eq.s32.totalorder %s25, 0
      %p186 = por %p184, %p185
      %p187 = scmp.ne.s32.totalorder %s175, %s176
      %p188 = scmp.eq.s32.totalorder %s26, 1
      %p189 = por %p187, %p188
      %p191 = scmp.ne.s32.totalorder %s176, %s190
      %p192 = scmp.eq.s32.totalorder %s26, 0
      %p193 = por %p191, %p192
      %s195 = sadd.s32 %s194, 1
      %p198 = scmp.eq.s32.totalorder %s20, 1
      %p199 = scmp.ne.s32.totalorder %s194, %s196
      %p200 = scmp.eq.s32.totalorder %s20, 0
      %p201 = por %p199, %p200
      %p202 = scmp.ne.s32.totalorder %s194, %s196
      %p203 = scmp.eq.s32.totalorder %s25, 1
      %p204 = por %p202, %p203
      %p205 = scmp.ne.s32.totalorder %s196, %s197
      %p206 = scmp.eq.s32.totalorder %s25, 0
      %p207 = por %p205, %p206
      %p208 = scmp.ne.s32.totalorder %s196, %s197
      %p209 = scmp.eq.s32.totalorder %s26, 1
      %p210 = por %p208, %p209
      %p212 = scmp.ne.s32.totalorder %s197, %s211
      %p213 = scmp.eq.s32.totalorder %s26, 0
      %p214 = por %p212, %p213
      %s216 = sadd.s32 %s215, 1
      %p219 = scmp.eq.s32.totalorder %s20, 1
      %p220 = scmp.ne.s32.totalorder %s215, %s217
      %p221 = scmp.eq.s32.totalorder %s20, 0
      %p222 = por %p220, %p221
      %p223 = scmp.ne.s32.totalorder %s215, %s217
      %p224 = scmp.eq.s32.totalorder %s25, 1
      %p225 = por %p223, %p224
      %p226 = scmp.ne.s32.totalorder %s217, %s218
      %p227 = scmp.eq.s32.totalorder %s25, 0
      %p228 = por %p226, %p227
      %p229 = scmp.ne.s32.totalorder %s217, %s218
      %p230 = scmp.eq.s32.totalorder %s26, 1
      %p231 = por %p229, %p230
      %p233 = scmp.ne.s32.totalorder %s218, %s232
      %p234 = scmp.eq.s32.totalorder %s26, 0
      %p235 = por %p233, %p234
      %s236 = ssub.s32 %s27, %s39
      %p237 = scmp.eq.s32.totalorder %s236, 0
      %s239 = sadd.s32 %s238, 1
      %s240 = scalar_select %p237, %s238, %s239
      %p243 = pneg %p237
      %p244 = scmp.eq.s32.totalorder %s20, 1
      %p245 = por %p243, %p244
      %p246 = scmp.ne.s32.totalorder %s238, %s241
      %p247 = scmp.eq.s32.totalorder %s20, 0
      %p248 = por %p246, %p247
      %p249 = scmp.ne.s32.totalorder %s238, %s241
      %p250 = scmp.eq.s32.totalorder %s25, 1
      %p251 = por %p249, %p250
      %p252 = scmp.ne.s32.totalorder %s241, %s242
      %p253 = scmp.eq.s32.totalorder %s25, 0
      %p254 = por %p252, %p253
      %p255 = scmp.ne.s32.totalorder %s241, %s242
      %p256 = scmp.eq.s32.totalorder %s26, 1
      %p257 = por %p255, %p256
      %p259 = scmp.ne.s32.totalorder %s242, %s258
      %p260 = scmp.eq.s32.totalorder %s26, 0
      %p261 = por %p259, %p260
      %p262 = scmp.le.s32.totalorder 1, %s20
      %p263 = scmp.lt.s32.totalorder %s20, 3
      %p264 = pnand %p262, %p263
      %p265 = pneg %p264
      // Predicated region
      $region9: #{tpu_custom_call.1} parent=5 // pred_check
        _
      $region10: #{tpu_custom_call.1} parent=5 // pred_check_branch
        %267 = sbr.rel (%p264) target = $region12
      $region11: #{tpu_custom_call.1} parent=5 // pred_region
        %s268 = ssub.s32 %s20, 1
        // Predicated region
        $region13: #{tpu_custom_call.1} parent=11 // pred_check
          %p269 = pneg %p165
        $region14: #{tpu_custom_call.1} parent=11 // pred_check_branch
          %271 = sbr.rel (%p269) target = $region16
        $region15: #{tpu_custom_call.1} parent=11 // pred_region
          _
        $region16: #{tpu_custom_call.1} parent=11 // pred_fallthru
          _
        // Predicated region
        $region17: #{tpu_custom_call.1} parent=11 // pred_check
          %p272 = pneg %p186
        $region18: #{tpu_custom_call.1} parent=11 // pred_check_branch
          %274 = sbr.rel (%p272) target = $region20
        $region19: #{tpu_custom_call.1} parent=11 // pred_region
          _
        $region20: #{tpu_custom_call.1} parent=11 // pred_fallthru
          _
        // Predicated region
        $region21: #{tpu_custom_call.1} parent=11 // pred_check
          %p275 = pneg %p207
        $region22: #{tpu_custom_call.1} parent=11 // pred_check_branch
          %277 = sbr.rel (%p275) target = $region24
        $region23: #{tpu_custom_call.1} parent=11 // pred_region
          _
        $region24: #{tpu_custom_call.1} parent=11 // pred_fallthru
          _
        // Predicated region
        $region25: #{tpu_custom_call.1} parent=11 // pred_check
          %p278 = pneg %p228
        $region26: #{tpu_custom_call.1} parent=11 // pred_check_branch
          %280 = sbr.rel (%p278) target = $region28
        $region27: #{tpu_custom_call.1} parent=11 // pred_region
          _
        $region28: #{tpu_custom_call.1} parent=11 // pred_fallthru
          _
      $region12: #{tpu_custom_call.1} parent=5 // pred_fallthru
        _
      %p281 = scmp.lt.s32.totalorder %s20, 2
      // Predicated region
      $region29: #{tpu_custom_call.1} parent=5 // pred_check
        %p282 = pneg %p281
      $region30: #{tpu_custom_call.1} parent=5 // pred_check_branch
        %284 = sbr.rel (%p282) target = $region32
      $region31: #{tpu_custom_call.1} parent=5 // pred_region
        // Predicated region
        $region33: #{tpu_custom_call.1} parent=31 // pred_check
          %p285 = pneg %p54
        $region34: #{tpu_custom_call.1} parent=31 // pred_check_branch
          %287 = sbr.rel (%p285) target = $region36
        $region35: #{tpu_custom_call.1} parent=31 // pred_region
          %s288 = sand.u32 %s44, 1
          %s289 = scalar_lea.sflag [#allocation5], %s288
          %s290 = sand.u32 %s44, 1
          %s291 = smul.addr %s290, 8
          %s292 = scalar_lea.vmem [#allocation4], %s291
          %s293 = smul.u32 2, %s28
          %s295 = ssub.s32 128, 128
          %296 = vsyncadd %s289, %s295
          %s297 = smul.addr %s27, 2
          %s298 = sadd.s32 %s293, %s297
          %s299 = smul.addr %s298, 64
          %s300 = scalar_lea.hbm %s0, %s299
          %s302 = sshll.u32 %s292, 4
          %s303 = int_to_ptr.vmem [resolvable:$true] %s302
          %305 = dma.hbm_to_vmem [thread:$0]  %s300, 128, %s303, %s289
        $region36: #{tpu_custom_call.1} parent=31 // pred_fallthru
          _
        // Predicated region
        $region37: #{tpu_custom_call.1} parent=31 // pred_check
          %p306 = pneg %p82
        $region38: #{tpu_custom_call.1} parent=31 // pred_check_branch
          %308 = sbr.rel (%p306) target = $region40
        $region39: #{tpu_custom_call.1} parent=31 // pred_region
          %s309 = sand.u32 %s20, 1
          %s310 = scalar_lea.sflag [#allocation7], %s309
          %s311 = sand.u32 %s72, 1
          %s312 = smul.addr %s311, 8
          %s313 = scalar_lea.vmem [#allocation6], %s312
          %s314 = smul.u32 2, %s28
          %s316 = ssub.s32 128, 128
          %317 = vsyncadd %s310, %s316
          %s318 = smul.addr %s27, 2
          %s319 = sadd.s32 %s314, %s318
          %s320 = smul.addr %s319, 64
          %s321 = scalar_lea.hbm %s1, %s320
          %s323 = sshll.u32 %s313, 4
          %s324 = int_to_ptr.vmem [resolvable:$true] %s323
          %326 = dma.hbm_to_vmem [thread:$0]  %s321, 128, %s324, %s310
        $region40: #{tpu_custom_call.1} parent=31 // pred_fallthru
          _
        // Predicated region
        $region41: #{tpu_custom_call.1} parent=31 // pred_check
          %p327 = pneg %p110
        $region42: #{tpu_custom_call.1} parent=31 // pred_check_branch
          %329 = sbr.rel (%p327) target = $region44
        $region43: #{tpu_custom_call.1} parent=31 // pred_region
          %s330 = smul.u32 2, %s28
          %p331 = scmp.lt.s32.totalorder %s27, 1
          %s332 = scalar_select %p331, %s27, 1
          %p333 = scmp.lt.s32.totalorder %s330, 1
          %s334 = scalar_select %p333, %s330, 1
          %s335 = smul.addr %s332, 2
          %s336 = sadd.s32 %s334, %s335
          %s337 = smul.addr %s336, 4
          %s338 = scalar_lea.vmem %s2, %s337
          %s339 = smul.u32 2, %s28
        $region44: #{tpu_custom_call.1} parent=31 // pred_fallthru
          _
        // Predicated region
        $region45: #{tpu_custom_call.1} parent=31 // pred_check
          %p340 = pneg %p138
        $region46: #{tpu_custom_call.1} parent=31 // pred_check_branch
          %342 = sbr.rel (%p340) target = $region48
        $region47: #{tpu_custom_call.1} parent=31 // pred_region
          %s343 = sand.u32 %s20, 1
          %s344 = scalar_lea.sflag [#allocation7], %s343
          %s345 = sand.u32 %s128, 1
          %s346 = smul.addr %s345, 8
          %s347 = scalar_lea.vmem [#allocation8], %s346
          %s348 = smul.u32 2, %s28
          %s350 = ssub.s32 128, 128
          %351 = vsyncadd %s344, %s350
          %s352 = smul.addr %s27, 2
          %s353 = sadd.s32 %s348, %s352
          %s354 = smul.addr %s353, 64
          %s355 = scalar_lea.hbm %s3, %s354
          %s357 = sshll.u32 %s347, 4
          %s358 = int_to_ptr.vmem [resolvable:$true] %s357
          %360 = dma.hbm_to_vmem [thread:$0]  %s355, 128, %s358, %s344
        $region48: #{tpu_custom_call.1} parent=31 // pred_fallthru
          _
      $region32: #{tpu_custom_call.1} parent=5 // pred_fallthru
        _
      %p361 = scmp.le.s32.totalorder 1, %s20
      %p362 = scmp.lt.s32.totalorder %s20, 3
      %p363 = pnand %p361, %p362
      %p364 = pneg %p363
      // Predicated region
      $region49: #{tpu_custom_call.1} parent=5 // pred_check
        _
      $region50: #{tpu_custom_call.1} parent=5 // pred_check_branch
        %366 = sbr.rel (%p363) target = $region52
      $region51: #{tpu_custom_call.1} parent=5 // pred_region
        %s367 = ssub.s32 %s20, 1
        %s368 = sand.u32 %s47, 1
        %s369 = scalar_lea.sflag [#allocation5], %s368
        %s370 = sand.u32 %s47, 1
        %s371 = smul.addr %s370, 8
        %s372 = scalar_lea.vmem [#allocation4], %s371
        // Predicated region
        $region53: #{tpu_custom_call.1} parent=51 // pred_check
          %p373 = pneg %p60
        $region54: #{tpu_custom_call.1} parent=51 // pred_check_branch
          %375 = sbr.rel (%p373) target = $region56
        $region55: #{tpu_custom_call.1} parent=51 // pred_region
          %376 = dma.done %s369, 128
        $region56: #{tpu_custom_call.1} parent=51 // pred_fallthru
          _
        %s377 = sand.u32 %s25, 1
        %s378 = scalar_lea.sflag [#allocation7], %s377
        %s379 = sand.u32 %s75, 1
        %s380 = smul.addr %s379, 8
        %s381 = scalar_lea.vmem [#allocation6], %s380
        // Predicated region
        $region57: #{tpu_custom_call.1} parent=51 // pred_check
          %p382 = pneg %p88
        $region58: #{tpu_custom_call.1} parent=51 // pred_check_branch
          %384 = sbr.rel (%p382) target = $region60
        $region59: #{tpu_custom_call.1} parent=51 // pred_region
          %385 = dma.done %s378, 128
        $region60: #{tpu_custom_call.1} parent=51 // pred_fallthru
          _
        %s386 = sand.u32 %s25, 1
        %s387 = scalar_lea.sflag [#allocation7], %s386
        %s388 = sand.u32 %s131, 1
        %s389 = smul.addr %s388, 8
        %s390 = scalar_lea.vmem [#allocation8], %s389
        // Predicated region
        $region61: #{tpu_custom_call.1} parent=51 // pred_check
          %p391 = pneg %p144
        $region62: #{tpu_custom_call.1} parent=51 // pred_check_branch
          %393 = sbr.rel (%p391) target = $region64
        $region63: #{tpu_custom_call.1} parent=51 // pred_region
          %394 = dma.done %s387, 128
        $region64: #{tpu_custom_call.1} parent=51 // pred_fallthru
          _
        %s395 = sand.u32 %s47, 1
        %s396 = scalar_lea.sflag [#allocation5], %s395
        %s397 = sand.u32 %s47, 1
        %s398 = smul.addr %s397, 8
        %s399 = scalar_lea.vmem [#allocation4], %s398
        %p400 = pneg %p60
        %p401 = pneg %p57
        %s402 = sand.u32 %s25, 1
        %s403 = scalar_lea.sflag [#allocation7], %s402
        %s404 = sand.u32 %s75, 1
        %s405 = smul.addr %s404, 8
        %s406 = scalar_lea.vmem [#allocation6], %s405
        %p407 = pneg %p88
        %p408 = pneg %p85
        %s409 = smul.u32 2, %s30
        %p410 = scmp.lt.s32.totalorder %s29, 1
        %s411 = scalar_select %p410, %s29, 1
        %p412 = scmp.lt.s32.totalorder %s409, 1
        %s413 = scalar_select %p412, %s409, 1
        %s414 = smul.addr %s411, 2
        %s415 = sadd.s32 %s413, %s414
        %s416 = smul.addr %s415, 4
        %s417 = scalar_lea.vmem %s2, %s416
        %p418 = pneg %p116
        %p419 = pneg %p113
        %s420 = sand.u32 %s25, 1
        %s421 = scalar_lea.sflag [#allocation7], %s420
        %s422 = sand.u32 %s131, 1
        %s423 = smul.addr %s422, 8
        %s424 = scalar_lea.vmem [#allocation8], %s423
        %p425 = pneg %p144
        %p426 = pneg %p141
        %p427 = pneg %p165
        %p428 = pneg %p162
        %p429 = pneg %p186
        %p430 = pneg %p183
        %p431 = pneg %p207
        %p432 = pneg %p204
        %p433 = pneg %p228
        %p434 = pneg %p225
        %p435 = pneg %p254
        %p436 = pneg %p251
        %p437 = scmp.lt.s32.totalorder %s29, 1
        %s438 = scalar_select %p437, %s29, 1
        %s439 = smul.addr %s438, 4
        %s440 = scalar_lea.vmem %s8, %s439
        %s441 = smul.u32 2, %s30
        %s442 = smul.u32 2, %s30
        %s443 = smul.u32 2, %s30
        %p444 = scmp.lt.s32.totalorder %s29, 1
        %s445 = scalar_select %p444, %s29, 1
        %p446 = scmp.lt.s32.totalorder %s443, 1
        %s447 = scalar_select %p446, %s443, 1
        %s448 = smul.addr %s445, 2
        %s449 = sadd.s32 %s447, %s448
        %s450 = smul.addr %s449, 4
        %s451 = scalar_lea.vmem %s2, %s450
        %s452 = smul.u32 2, %s30
        %s453 = smul.u32 2, %s30
        %p454 = scmp.lt.s32.totalorder %s29, 1
        %s455 = scalar_select %p454, %s29, 1
        %s456 = smul.addr %s455, 4
        %s457 = scalar_lea.vmem %s8, %s456
        %p458 = scmp.eq.s32.totalorder %s30, 0
        // Predicated region
        $region65: #{tpu_custom_call.1} parent=51 // pred_check
          %p459 = pneg %p458
        $region66: #{tpu_custom_call.1} parent=51 // pred_check_branch
          %461 = sbr.rel (%p459) target = $region68
        $region67: #{tpu_custom_call.1} parent=51 // pred_region
          %vm462 = vcmask 27648
          %463 = vst.msk [vmem:[#allocation2] sm:$0xf] %vm462, 0.0
          %464 = vst.msk [vmem:[#allocation3] sm:$0xf] %vm462, -inf
        $region68: #{tpu_custom_call.1} parent=51 // pred_fallthru
          _
        %v465 = vld [vmem:[%s372] sm:$0xff]
        %v467 = vcombine.high %v465, %v465
        %vm469 = vcmask 1043456
        %v470 = vsel %vm469, %v465, 0.0
        %v471 = vsel %vm469, %v467, 0.0
        %v472 = vadd.f32 %v470, %v471
        %473 = vadd.xlane.f32.xlu0 %v472
        %v474 = vpop.xlane.xlu0 %473
        %v475 = vsel %vm469, %v465, -inf
        %v476 = vsel %vm469, %v467, -inf
        %v477 = vmax.f32 %v475, %v476
        %478 = vmax.xlane.f32.xlu0 %v477
        %v479 = vpop.xlane.xlu0 %478
        %v480 = vld [vmem:[%s381] sm:$0xff]
        %v482 = vcombine.high %v480, %v480
        %v484 = vsel %vm469, %v480, 0.0
        %v485 = vsel %vm469, %v482, 0.0
        %v486 = vadd.f32 %v484, %v485
        %487 = vadd.xlane.f32.xlu0 %v486
        %v488 = vpop.xlane.xlu0 %487
        %v489 = vsel %vm469, %v480, -inf
        %v490 = vsel %vm469, %v482, -inf
        %v491 = vmax.f32 %v489, %v490
        %492 = vmax.xlane.f32.xlu0 %v491
        %v493 = vpop.xlane.xlu0 %492
        %v494 = vld [vmem:[%s451] sm:$0xff]
        %v496 = vcombine.high %v494, %v494
        %v498 = vsel %vm469, %v494, 0.0
        %v499 = vsel %vm469, %v496, 0.0
        %v500 = vadd.f32 %v498, %v499
        %501 = vadd.xlane.f32.xlu0 %v500
        %v502 = vpop.xlane.xlu0 %501
        %v503 = vsel %vm469, %v494, -inf
        %v504 = vsel %vm469, %v496, -inf
        %v505 = vmax.f32 %v503, %v504
        %506 = vmax.xlane.f32.xlu0 %v505
        %v507 = vpop.xlane.xlu0 %506
        %v508 = vld [vmem:[%s390] sm:$0xff]
        %v510 = vcombine.high %v508, %v508
        %v512 = vsel %vm469, %v508, 0.0
        %v513 = vsel %vm469, %v510, 0.0
        %v514 = vadd.f32 %v512, %v513
        %515 = vadd.xlane.f32.xlu0 %v514
        %v516 = vpop.xlane.xlu0 %515
        %v517 = vsel %vm469, %v508, -inf
        %v518 = vsel %vm469, %v510, -inf
        %v519 = vmax.f32 %v517, %v518
        %520 = vmax.xlane.f32.xlu0 %v519
        %v521 = vpop.xlane.xlu0 %520
        %v522 = vld [vmem:[#allocation2] sm:$0xf]
        %vm523 = vcmask 7168
        %v524 = vsel %vm523, %v474, %v488
        %vm525 = vcmask 15360
        %v526 = vsel %vm525, %v524, %v502
        %vm527 = vcmask 23552
        %v528 = vsel %vm527, %v526, %v516
        %v529 = vadd.f32 %v522, %v528
        %vm530 = vcmask 27648
        %531 = vst.msk [vmem:[#allocation2] sm:$0xf] %vm530, %v529
        %v532 = vld [vmem:[#allocation3] sm:$0xf]
        %v533 = vsel %vm523, %v479, %v493
        %v534 = vsel %vm525, %v533, %v507
        %v535 = vsel %vm527, %v534, %v521
        %v536 = vmax.f32 %v532, %v535
        %537 = vst.msk [vmem:[#allocation3] sm:$0xf] %vm530, %v536
        // Predicated region
        $region69: #{tpu_custom_call.1} parent=51 // pred_check
          %p538 = pneg %p458
        $region70: #{tpu_custom_call.1} parent=51 // pred_check_branch
          %540 = sbr.rel (%p538) target = $region72
        $region71: #{tpu_custom_call.1} parent=51 // pred_region
          %v541 = vld [vmem:[#allocation2] sm:$0xf]
          %v542 = vmul.f32 %v541, 0.00390625
          %v543 = vld [vmem:[#allocation3] sm:$0xf]
          %v545 = vrot.slane %v543, 4
          %548 = vrot.lane.b32.xlu0 %v542, 126
          %v549 = vpop.permute.xlu0 %548
          %551 = vrot.lane.b32.xlu0 %v545, 126
          %v552 = vpop.permute.xlu0 %551
          %v554 = vsel %vm469, %v542, %v545
          %v555 = vsel %vm469, %v549, %v552
          %v556 = vld [vmem:[%s4] sm:$0xf]
          %v557 = vld [vmem:[%s5] sm:$0xf]
          %559 = vset.pattern.permute.xlu0 0
          %560 = vperm.xlu0 %559, %v557
          %v561 = vpop.permute.xlu0 %560
          %vm563 = vcmask 130048
          %v565 = vsel %vm563, %v556, 0
          %567 = vmatprep.subr.mxu0 0.0
          %v568 = vand.u32 %v554, 4294901760
          %569 = vmatpush1.msra.mxu0 %v568
          %570 = vmatprep.subr.mxu0 0.0
          %v571 = vand.u32 %v555, 4294901760
          %572 = vmatpush1.msra.mxu0 %v571
          %573 = vmatprep.subr.mxu0 0.0
          %574 = vmatpush1.msra.mxu0 0.0
          %575 = vmatprep.subr.mxu0 0.0
          %576 = vmatpush1.msra.mxu0 0.0
          %577 = vmatprep.subr.mxu0 0.0
          %578 = vmatpush1.msra.mxu0 0.0
          %579 = vmatprep.subr.mxu0 0.0
          %580 = vmatpush1.msra.mxu0 0.0
          %581 = vmatprep.subr.mxu0 0.0
          %582 = vmatpush1.msra.mxu0 0.0
          %583 = vmatprep.subr.mxu0 0.0
          %584 = vmatpush1.msra.mxu0 0.0
          %585 = vmatprep.subr.mxu0 0.0
          %586 = vmatpush1.msra.mxu0 0.0
          %587 = vmatprep.subr.mxu0 0.0
          %588 = vmatpush1.msra.mxu0 0.0
          %589 = vmatprep.subr.mxu0 0.0
          %590 = vmatpush1.msra.mxu0 0.0
          %591 = vmatprep.subr.mxu0 0.0
          %592 = vmatpush1.msra.mxu0 0.0
          %593 = vmatprep.subr.mxu0 0.0
          %594 = vmatpush1.msra.mxu0 0.0
          %595 = vmatprep.subr.mxu0 0.0
          %596 = vmatpush1.msra.mxu0 0.0
          %597 = vmatprep.subr.mxu0 0.0
          %598 = vmatpush1.msra.mxu0 0.0
          %599 = vmatprep.subr.mxu0 0.0
          %600 = vmatpush1.msra.mxu0 0.0
          %601 = vmatprep.subr.mxu0 0.0
          %602 = vmatpush1.msra.mxu0 0.0
          %603 = vmatprep.subr.mxu0 0.0
          %604 = vmatpush1.msra.mxu0 0.0
          %605 = vmatprep.subr.mxu0 0.0
          %606 = vmatpush1.msra.mxu0 0.0
          %607 = vmatprep.subr.mxu0 0.0
          %608 = vmatpush1.msra.mxu0 0.0
          %609 = vmatprep.subr.mxu0 0.0
          %610 = vmatpush1.msra.mxu0 0.0
          %611 = vmatprep.subr.mxu0 0.0
          %612 = vmatpush1.msra.mxu0 0.0
          %613 = vmatprep.subr.mxu0 0.0
          %614 = vmatpush1.msra.mxu0 0.0
          %615 = vmatprep.subr.mxu0 0.0
          %616 = vmatpush1.msra.mxu0 0.0
          %617 = vmatprep.subr.mxu0 0.0
          %618 = vmatpush1.msra.mxu0 0.0
          %619 = vmatprep.subr.mxu0 0.0
          %620 = vmatpush1.msra.mxu0 0.0
          %621 = vmatprep.subr.mxu0 0.0
          %622 = vmatpush1.msra.mxu0 0.0
          %623 = vmatprep.subr.mxu0 0.0
          %624 = vmatpush1.msra.mxu0 0.0
          %625 = vmatprep.subr.mxu0 0.0
          %626 = vmatpush1.msra.mxu0 0.0
          %627 = vmatprep.subr.mxu0 0.0
          %628 = vmatpush1.msra.mxu0 0.0
          %629 = vmatprep.subr.mxu0 0.0
          %630 = vmatpush1.msra.mxu0 0.0
          %631 = vmatprep.subr.mxu0 0.0
          %632 = vmatpush1.msra.mxu0 0.0
          %633 = vmatprep.mubr.f32.mxu0 0.0
          %v634 = vand.u32 %v565, 4294901760
          %v635 = vsub.f32 %v565, %v634
          %v636 = vand.u32 %v635, 4294901760
          %v637 = vsub.f32 %v635, %v636
          %v638 = vand.u32 %v637, 4294901760
          %639 = vmatmul.mubr.f32.gmra.mrb[0].mxu0 %v638
          %v640 = vpop.f32.mrb[0].mxu0
          %v641 = vadd.f32 %v561, %v640
          %v642 = vpop.f32.mrb[0].mxu0
          %643 = vdwg.mxu0
          %644 = vmatprep.subr.mxu0 0.0
          %v645 = vand.u32 %v554, 4294901760
          %v646 = vsub.f32 %v554, %v645
          %v647 = vand.u32 %v646, 4294901760
          %v648 = vsub.f32 %v646, %v647
          %v649 = vand.u32 %v648, 4294901760
          %650 = vmatpush1.msra.mxu0 %v649
          %651 = vmatprep.subr.mxu0 0.0
          %v652 = vand.u32 %v555, 4294901760
          %v653 = vsub.f32 %v555, %v652
          %v654 = vand.u32 %v653, 4294901760
          %v655 = vsub.f32 %v653, %v654
          %v656 = vand.u32 %v655, 4294901760
          %657 = vmatpush1.msra.mxu0 %v656
          %658 = vmatprep.subr.mxu0 0.0
          %659 = vmatpush1.msra.mxu0 0.0
          %660 = vmatprep.subr.mxu0 0.0
          %661 = vmatpush1.msra.mxu0 0.0
          %662 = vmatprep.subr.mxu0 0.0
          %663 = vmatpush1.msra.mxu0 0.0
          %664 = vmatprep.subr.mxu0 0.0
          %665 = vmatpush1.msra.mxu0 0.0
          %666 = vmatprep.subr.mxu0 0.0
          %667 = vmatpush1.msra.mxu0 0.0
          %668 = vmatprep.subr.mxu0 0.0
          %669 = vmatpush1.msra.mxu0 0.0
          %670 = vmatprep.subr.mxu0 0.0
          %671 = vmatpush1.msra.mxu0 0.0
          %672 = vmatprep.subr.mxu0 0.0
          %673 = vmatpush1.msra.mxu0 0.0
          %674 = vmatprep.subr.mxu0 0.0
          %675 = vmatpush1.msra.mxu0 0.0
          %676 = vmatprep.subr.mxu0 0.0
          %677 = vmatpush1.msra.mxu0 0.0
          %678 = vmatprep.subr.mxu0 0.0
          %679 = vmatpush1.msra.mxu0 0.0
          %680 = vmatprep.subr.mxu0 0.0
          %681 = vmatpush1.msra.mxu0 0.0
          %682 = vmatprep.subr.mxu0 0.0
          %683 = vmatpush1.msra.mxu0 0.0
          %684 = vmatprep.subr.mxu0 0.0
          %685 = vmatpush1.msra.mxu0 0.0
          %686 = vmatprep.subr.mxu0 0.0
          %687 = vmatpush1.msra.mxu0 0.0
          %688 = vmatprep.subr.mxu0 0.0
          %689 = vmatpush1.msra.mxu0 0.0
          %690 = vmatprep.subr.mxu0 0.0
          %691 = vmatpush1.msra.mxu0 0.0
          %692 = vmatprep.subr.mxu0 0.0
          %693 = vmatpush1.msra.mxu0 0.0
          %694 = vmatprep.subr.mxu0 0.0
          %695 = vmatpush1.msra.mxu0 0.0
          %696 = vmatprep.subr.mxu0 0.0
          %697 = vmatpush1.msra.mxu0 0.0
          %698 = vmatprep.subr.mxu0 0.0
          %699 = vmatpush1.msra.mxu0 0.0
          %700 = vmatprep.subr.mxu0 0.0
          %701 = vmatpush1.msra.mxu0 0.0
          %702 = vmatprep.subr.mxu0 0.0
          %703 = vmatpush1.msra.mxu0 0.0
          %704 = vmatprep.subr.mxu0 0.0
          %705 = vmatpush1.msra.mxu0 0.0
          %706 = vmatprep.subr.mxu0 0.0
          %707 = vmatpush1.msra.mxu0 0.0
          %708 = vmatprep.subr.mxu0 0.0
          %709 = vmatpush1.msra.mxu0 0.0
          %710 = vmatprep.subr.mxu0 0.0
          %711 = vmatpush1.msra.mxu0 0.0
          %712 = vmatprep.subr.mxu0 0.0
          %713 = vmatpush1.msra.mxu0 0.0
          %714 = vmatprep.subr.mxu0 0.0
          %715 = vmatpush1.msra.mxu0 0.0
          %716 = vmatprep.subr.mxu0 0.0
          %717 = vmatpush1.msra.mxu0 0.0
          %718 = vmatprep.mubr.f32.mxu0 0.0
          %v719 = vand.u32 %v565, 4294901760
          %720 = vmatmul.mubr.f32.gmra.mrb[0].mxu0 %v719
          %v721 = vpop.f32.mrb[0].mxu0
          %v722 = vadd.f32 %v641, %v721
          %v723 = vpop.f32.mrb[0].mxu0
          %724 = vdwg.mxu0
          %725 = vmatprep.subr.mxu0 0.0
          %v726 = vand.u32 %v554, 4294901760
          %v727 = vsub.f32 %v554, %v726
          %728 = vmatpush1.msra.mxu0 %v727
          %729 = vmatprep.subr.mxu0 0.0
          %v730 = vand.u32 %v555, 4294901760
          %v731 = vsub.f32 %v555, %v730
          %732 = vmatpush1.msra.mxu0 %v731
          %733 = vmatprep.subr.mxu0 0.0
          %734 = vmatpush1.msra.mxu0 0.0
          %735 = vmatprep.subr.mxu0 0.0
          %736 = vmatpush1.msra.mxu0 0.0
          %737 = vmatprep.subr.mxu0 0.0
          %738 = vmatpush1.msra.mxu0 0.0
          %739 = vmatprep.subr.mxu0 0.0
          %740 = vmatpush1.msra.mxu0 0.0
          %741 = vmatprep.subr.mxu0 0.0
          %742 = vmatpush1.msra.mxu0 0.0
          %743 = vmatprep.subr.mxu0 0.0
          %744 = vmatpush1.msra.mxu0 0.0
          %745 = vmatprep.subr.mxu0 0.0
          %746 = vmatpush1.msra.mxu0 0.0
          %747 = vmatprep.subr.mxu0 0.0
          %748 = vmatpush1.msra.mxu0 0.0
          %749 = vmatprep.subr.mxu0 0.0
          %750 = vmatpush1.msra.mxu0 0.0
          %751 = vmatprep.subr.mxu0 0.0
          %752 = vmatpush1.msra.mxu0 0.0
          %753 = vmatprep.subr.mxu0 0.0
          %754 = vmatpush1.msra.mxu0 0.0
          %755 = vmatprep.subr.mxu0 0.0
          %756 = vmatpush1.msra.mxu0 0.0
          %757 = vmatprep.subr.mxu0 0.0
          %758 = vmatpush1.msra.mxu0 0.0
          %759 = vmatprep.subr.mxu0 0.0
          %760 = vmatpush1.msra.mxu0 0.0
          %761 = vmatprep.subr.mxu0 0.0
          %762 = vmatpush1.msra.mxu0 0.0
          %763 = vmatprep.subr.mxu0 0.0
          %764 = vmatpush1.msra.mxu0 0.0
          %765 = vmatprep.subr.mxu0 0.0
          %766 = vmatpush1.msra.mxu0 0.0
          %767 = vmatprep.subr.mxu0 0.0
          %768 = vmatpush1.msra.mxu0 0.0
          %769 = vmatprep.subr.mxu0 0.0
          %770 = vmatpush1.msra.mxu0 0.0
          %771 = vmatprep.subr.mxu0 0.0
          %772 = vmatpush1.msra.mxu0 0.0
          %773 = vmatprep.subr.mxu0 0.0
          %774 = vmatpush1.msra.mxu0 0.0
          %775 = vmatprep.subr.mxu0 0.0
          %776 = vmatpush1.msra.mxu0 0.0
          %777 = vmatprep.subr.mxu0 0.0
          %778 = vmatpush1.msra.mxu0 0.0
          %779 = vmatprep.subr.mxu0 0.0
          %780 = vmatpush1.msra.mxu0 0.0
          %781 = vmatprep.subr.mxu0 0.0
          %782 = vmatpush1.msra.mxu0 0.0
          %783 = vmatprep.subr.mxu0 0.0
          %784 = vmatpush1.msra.mxu0 0.0
          %785 = vmatprep.subr.mxu0 0.0
          %786 = vmatpush1.msra.mxu0 0.0
          %787 = vmatprep.subr.mxu0 0.0
          %788 = vmatpush1.msra.mxu0 0.0
          %789 = vmatprep.subr.mxu0 0.0
          %790 = vmatpush1.msra.mxu0 0.0
          %791 = vmatprep.subr.mxu0 0.0
          %792 = vmatpush1.msra.mxu0 0.0
          %793 = vmatprep.mubr.f32.mxu0 0.0
          %v794 = vand.u32 %v565, 4294901760
          %v795 = vsub.f32 %v565, %v794
          %796 = vmatmul.mubr.f32.gmra.mrb[0].mxu0 %v795
          %v797 = vpop.f32.mrb[0].mxu0
          %v798 = vadd.f32 %v722, %v797
          %v799 = vpop.f32.mrb[0].mxu0
          %800 = vdwg.mxu0
          %801 = vmatprep.subr.mxu0 0.0
          %v802 = vand.u32 %v554, 4294901760
          %803 = vmatpush1.msra.mxu0 %v802
          %804 = vmatprep.subr.mxu0 0.0
          %v805 = vand.u32 %v555, 4294901760
          %806 = vmatpush1.msra.mxu0 %v805
          %807 = vmatprep.subr.mxu0 0.0
          %808 = vmatpush1.msra.mxu0 0.0
          %809 = vmatprep.subr.mxu0 0.0
          %810 = vmatpush1.msra.mxu0 0.0
          %811 = vmatprep.subr.mxu0 0.0
          %812 = vmatpush1.msra.mxu0 0.0
          %813 = vmatprep.subr.mxu0 0.0
          %814 = vmatpush1.msra.mxu0 0.0
          %815 = vmatprep.subr.mxu0 0.0
          %816 = vmatpush1.msra.mxu0 0.0
          %817 = vmatprep.subr.mxu0 0.0
          %818 = vmatpush1.msra.mxu0 0.0
          %819 = vmatprep.subr.mxu0 0.0
          %820 = vmatpush1.msra.mxu0 0.0
          %821 = vmatprep.subr.mxu0 0.0
          %822 = vmatpush1.msra.mxu0 0.0
          %823 = vmatprep.subr.mxu0 0.0
          %824 = vmatpush1.msra.mxu0 0.0
          %825 = vmatprep.subr.mxu0 0.0
          %826 = vmatpush1.msra.mxu0 0.0
          %827 = vmatprep.subr.mxu0 0.0
          %828 = vmatpush1.msra.mxu0 0.0
          %829 = vmatprep.subr.mxu0 0.0
          %830 = vmatpush1.msra.mxu0 0.0
          %831 = vmatprep.subr.mxu0 0.0
          %832 = vmatpush1.msra.mxu0 0.0
          %833 = vmatprep.subr.mxu0 0.0
          %834 = vmatpush1.msra.mxu0 0.0
          %835 = vmatprep.subr.mxu0 0.0
          %836 = vmatpush1.msra.mxu0 0.0
          %837 = vmatprep.subr.mxu0 0.0
          %838 = vmatpush1.msra.mxu0 0.0
          %839 = vmatprep.subr.mxu0 0.0
          %840 = vmatpush1.msra.mxu0 0.0
          %841 = vmatprep.subr.mxu0 0.0
          %842 = vmatpush1.msra.mxu0 0.0
          %843 = vmatprep.subr.mxu0 0.0
          %844 = vmatpush1.msra.mxu0 0.0
          %845 = vmatprep.subr.mxu0 0.0
          %846 = vmatpush1.msra.mxu0 0.0
          %847 = vmatprep.subr.mxu0 0.0
          %848 = vmatpush1.msra.mxu0 0.0
          %849 = vmatprep.subr.mxu0 0.0
          %850 = vmatpush1.msra.mxu0 0.0
          %851 = vmatprep.subr.mxu0 0.0
          %852 = vmatpush1.msra.mxu0 0.0
          %853 = vmatprep.subr.mxu0 0.0
          %854 = vmatpush1.msra.mxu0 0.0
          %855 = vmatprep.subr.mxu0 0.0
          %856 = vmatpush1.msra.mxu0 0.0
          %857 = vmatprep.subr.mxu0 0.0
          %858 = vmatpush1.msra.mxu0 0.0
          %859 = vmatprep.subr.mxu0 0.0
          %860 = vmatpush1.msra.mxu0 0.0
          %861 = vmatprep.subr.mxu0 0.0
          %862 = vmatpush1.msra.mxu0 0.0
          %863 = vmatprep.subr.mxu0 0.0
          %864 = vmatpush1.msra.mxu0 0.0
          %865 = vmatprep.subr.mxu0 0.0
          %866 = vmatpush1.msra.mxu0 0.0
          %867 = vmatprep.mubr.f32.mxu0 0.0
          %v868 = vand.u32 %v565, 4294901760
          %v869 = vsub.f32 %v565, %v868
          %v870 = vand.u32 %v869, 4294901760
          %871 = vmatmul.mubr.f32.gmra.mrb[0].mxu0 %v870
          %v872 = vpop.f32.mrb[0].mxu0
          %v873 = vadd.f32 %v798, %v872
          %v874 = vpop.f32.mrb[0].mxu0
          %875 = vdwg.mxu0
          %876 = vmatprep.subr.mxu0 0.0
          %v877 = vand.u32 %v554, 4294901760
          %v878 = vsub.f32 %v554, %v877
          %v879 = vand.u32 %v878, 4294901760
          %880 = vmatpush1.msra.mxu0 %v879
          %881 = vmatprep.subr.mxu0 0.0
          %v882 = vand.u32 %v555, 4294901760
          %v883 = vsub.f32 %v555, %v882
          %v884 = vand.u32 %v883, 4294901760
          %885 = vmatpush1.msra.mxu0 %v884
          %886 = vmatprep.subr.mxu0 0.0
          %887 = vmatpush1.msra.mxu0 0.0
          %888 = vmatprep.subr.mxu0 0.0
          %889 = vmatpush1.msra.mxu0 0.0
          %890 = vmatprep.subr.mxu0 0.0
          %891 = vmatpush1.msra.mxu0 0.0
          %892 = vmatprep.subr.mxu0 0.0
          %893 = vmatpush1.msra.mxu0 0.0
          %894 = vmatprep.subr.mxu0 0.0
          %895 = vmatpush1.msra.mxu0 0.0
          %896 = vmatprep.subr.mxu0 0.0
          %897 = vmatpush1.msra.mxu0 0.0
          %898 = vmatprep.subr.mxu0 0.0
          %899 = vmatpush1.msra.mxu0 0.0
          %900 = vmatprep.subr.mxu0 0.0
          %901 = vmatpush1.msra.mxu0 0.0
          %902 = vmatprep.subr.mxu0 0.0
          %903 = vmatpush1.msra.mxu0 0.0
          %904 = vmatprep.subr.mxu0 0.0
          %905 = vmatpush1.msra.mxu0 0.0
          %906 = vmatprep.subr.mxu0 0.0
          %907 = vmatpush1.msra.mxu0 0.0
          %908 = vmatprep.subr.mxu0 0.0
          %909 = vmatpush1.msra.mxu0 0.0
          %910 = vmatprep.subr.mxu0 0.0
          %911 = vmatpush1.msra.mxu0 0.0
          %912 = vmatprep.subr.mxu0 0.0
          %913 = vmatpush1.msra.mxu0 0.0
          %914 = vmatprep.subr.mxu0 0.0
          %915 = vmatpush1.msra.mxu0 0.0
          %916 = vmatprep.subr.mxu0 0.0
          %917 = vmatpush1.msra.mxu0 0.0
          %918 = vmatprep.subr.mxu0 0.0
          %919 = vmatpush1.msra.mxu0 0.0
          %920 = vmatprep.subr.mxu0 0.0
          %921 = vmatpush1.msra.mxu0 0.0
          %922 = vmatprep.subr.mxu0 0.0
          %923 = vmatpush1.msra.mxu0 0.0
          %924 = vmatprep.subr.mxu0 0.0
          %925 = vmatpush1.msra.mxu0 0.0
          %926 = vmatprep.subr.mxu0 0.0
          %927 = vmatpush1.msra.mxu0 0.0
          %928 = vmatprep.subr.mxu0 0.0
          %929 = vmatpush1.msra.mxu0 0.0
          %930 = vmatprep.subr.mxu0 0.0
          %931 = vmatpush1.msra.mxu0 0.0
          %932 = vmatprep.subr.mxu0 0.0
          %933 = vmatpush1.msra.mxu0 0.0
          %934 = vmatprep.subr.mxu0 0.0
          %935 = vmatpush1.msra.mxu0 0.0
          %936 = vmatprep.subr.mxu0 0.0
          %937 = vmatpush1.msra.mxu0 0.0
          %938 = vmatprep.subr.mxu0 0.0
          %939 = vmatpush1.msra.mxu0 0.0
          %940 = vmatprep.subr.mxu0 0.0
          %941 = vmatpush1.msra.mxu0 0.0
          %942 = vmatprep.subr.mxu0 0.0
          %943 = vmatpush1.msra.mxu0 0.0
          %944 = vmatprep.subr.mxu0 0.0
          %945 = vmatpush1.msra.mxu0 0.0
          %946 = vmatprep.mubr.f32.mxu0 0.0
          %v947 = vand.u32 %v565, 4294901760
          %948 = vmatmul.mubr.f32.gmra.mrb[0].mxu0 %v947
          %v949 = vpop.f32.mrb[0].mxu0
          %v950 = vadd.f32 %v873, %v949
          %v951 = vpop.f32.mrb[0].mxu0
          %952 = vdwg.mxu0
          %953 = vmatprep.subr.mxu0 0.0
          %v954 = vand.u32 %v554, 4294901760
          %955 = vmatpush1.msra.mxu0 %v954
          %956 = vmatprep.subr.mxu0 0.0
          %v957 = vand.u32 %v555, 4294901760
          %958 = vmatpush1.msra.mxu0 %v957
          %959 = vmatprep.subr.mxu0 0.0
          %960 = vmatpush1.msra.mxu0 0.0
          %961 = vmatprep.subr.mxu0 0.0
          %962 = vmatpush1.msra.mxu0 0.0
          %963 = vmatprep.subr.mxu0 0.0
          %964 = vmatpush1.msra.mxu0 0.0
          %965 = vmatprep.subr.mxu0 0.0
          %966 = vmatpush1.msra.mxu0 0.0
          %967 = vmatprep.subr.mxu0 0.0
          %968 = vmatpush1.msra.mxu0 0.0
          %969 = vmatprep.subr.mxu0 0.0
          %970 = vmatpush1.msra.mxu0 0.0
          %971 = vmatprep.subr.mxu0 0.0
          %972 = vmatpush1.msra.mxu0 0.0
          %973 = vmatprep.subr.mxu0 0.0
          %974 = vmatpush1.msra.mxu0 0.0
          %975 = vmatprep.subr.mxu0 0.0
          %976 = vmatpush1.msra.mxu0 0.0
          %977 = vmatprep.subr.mxu0 0.0
          %978 = vmatpush1.msra.mxu0 0.0
          %979 = vmatprep.subr.mxu0 0.0
          %980 = vmatpush1.msra.mxu0 0.0
          %981 = vmatprep.subr.mxu0 0.0
          %982 = vmatpush1.msra.mxu0 0.0
          %983 = vmatprep.subr.mxu0 0.0
          %984 = vmatpush1.msra.mxu0 0.0
          %985 = vmatprep.subr.mxu0 0.0
          %986 = vmatpush1.msra.mxu0 0.0
          %987 = vmatprep.subr.mxu0 0.0
          %988 = vmatpush1.msra.mxu0 0.0
          %989 = vmatprep.subr.mxu0 0.0
          %990 = vmatpush1.msra.mxu0 0.0
          %991 = vmatprep.subr.mxu0 0.0
          %992 = vmatpush1.msra.mxu0 0.0
          %993 = vmatprep.subr.mxu0 0.0
          %994 = vmatpush1.msra.mxu0 0.0
          %995 = vmatprep.subr.mxu0 0.0
          %996 = vmatpush1.msra.mxu0 0.0
          %997 = vmatprep.subr.mxu0 0.0
          %998 = vmatpush1.msra.mxu0 0.0
          %999 = vmatprep.subr.mxu0 0.0
          %1000 = vmatpush1.msra.mxu0 0.0
          %1001 = vmatprep.subr.mxu0 0.0
          %1002 = vmatpush1.msra.mxu0 0.0
          %1003 = vmatprep.subr.mxu0 0.0
          %1004 = vmatpush1.msra.mxu0 0.0
          %1005 = vmatprep.subr.mxu0 0.0
          %1006 = vmatpush1.msra.mxu0 0.0
          %1007 = vmatprep.subr.mxu0 0.0
          %1008 = vmatpush1.msra.mxu0 0.0
          %1009 = vmatprep.subr.mxu0 0.0
          %1010 = vmatpush1.msra.mxu0 0.0
          %1011 = vmatprep.subr.mxu0 0.0
          %1012 = vmatpush1.msra.mxu0 0.0
          %1013 = vmatprep.subr.mxu0 0.0
          %1014 = vmatpush1.msra.mxu0 0.0
          %1015 = vmatprep.subr.mxu0 0.0
          %1016 = vmatpush1.msra.mxu0 0.0
          %1017 = vmatprep.subr.mxu0 0.0
          %1018 = vmatpush1.msra.mxu0 0.0
          %1019 = vmatprep.mubr.f32.mxu0 0.0
          %v1020 = vand.u32 %v565, 4294901760
          %1021 = vmatmul.mubr.f32.gmra.mrb[0].mxu0 %v1020
          %v1022 = vpop.f32.mrb[0].mxu0
          %v1023 = vadd.f32 %v950, %v1022
          %v1024 = vpop.f32.mrb[0].mxu0
          %1025 = vdwg.mxu0
          %v1026 = vmax.f32 %v1023, 0.0
          %v1027 = vld [vmem:[%s6] sm:$0xf]
          %v1028 = vld [vmem:[%s7] sm:$0xf]
          %1030 = vset.pattern.permute.xlu0 0
          %1031 = vperm.xlu0 %1030, %v1028
          %v1032 = vpop.permute.xlu0 %1031
          %vm1034 = vcmask 31744
          %v1036 = vsel %vm1034, %v1027, 0
          %v1039 = vsel %vm469, %v1026, 0
          %1041 = vmatprep.subr.mxu0 0.0
          %v1042 = vand.u32 %v1039, 4294901760
          %1043 = vmatpush1.msra.mxu0 %v1042
          %1044 = vmatprep.subr.mxu0 0.0
          %1045 = vmatpush1.msra.mxu0 0.0
          %1046 = vmatprep.subr.mxu0 0.0
          %1047 = vmatpush1.msra.mxu0 0.0
          %1048 = vmatprep.subr.mxu0 0.0
          %1049 = vmatpush1.msra.mxu0 0.0
          %1050 = vmatprep.subr.mxu0 0.0
          %1051 = vmatpush1.msra.mxu0 0.0
          %1052 = vmatprep.subr.mxu0 0.0
          %1053 = vmatpush1.msra.mxu0 0.0
          %1054 = vmatprep.subr.mxu0 0.0
          %1055 = vmatpush1.msra.mxu0 0.0
          %1056 = vmatprep.subr.mxu0 0.0
          %1057 = vmatpush1.msra.mxu0 0.0
          %1058 = vmatprep.subr.mxu0 0.0
          %1059 = vmatpush1.msra.mxu0 0.0
          %1060 = vmatprep.subr.mxu0 0.0
          %1061 = vmatpush1.msra.mxu0 0.0
          %1062 = vmatprep.subr.mxu0 0.0
          %1063 = vmatpush1.msra.mxu0 0.0
          %1064 = vmatprep.subr.mxu0 0.0
          %1065 = vmatpush1.msra.mxu0 0.0
          %1066 = vmatprep.subr.mxu0 0.0
          %1067 = vmatpush1.msra.mxu0 0.0
          %1068 = vmatprep.subr.mxu0 0.0
          %1069 = vmatpush1.msra.mxu0 0.0
          %1070 = vmatprep.subr.mxu0 0.0
          %1071 = vmatpush1.msra.mxu0 0.0
          %1072 = vmatprep.subr.mxu0 0.0
          %1073 = vmatpush1.msra.mxu0 0.0
          %1074 = vmatprep.subr.mxu0 0.0
          %1075 = vmatpush1.msra.mxu0 0.0
          %1076 = vmatprep.subr.mxu0 0.0
          %1077 = vmatpush1.msra.mxu0 0.0
          %1078 = vmatprep.subr.mxu0 0.0
          %1079 = vmatpush1.msra.mxu0 0.0
          %1080 = vmatprep.subr.mxu0 0.0
          %1081 = vmatpush1.msra.mxu0 0.0
          %1082 = vmatprep.subr.mxu0 0.0
          %1083 = vmatpush1.msra.mxu0 0.0
          %1084 = vmatprep.subr.mxu0 0.0
          %1085 = vmatpush1.msra.mxu0 0.0
          %1086 = vmatprep.subr.mxu0 0.0
          %1087 = vmatpush1.msra.mxu0 0.0
          %1088 = vmatprep.subr.mxu0 0.0
          %1089 = vmatpush1.msra.mxu0 0.0
          %1090 = vmatprep.subr.mxu0 0.0
          %1091 = vmatpush1.msra.mxu0 0.0
          %1092 = vmatprep.subr.mxu0 0.0
          %1093 = vmatpush1.msra.mxu0 0.0
          %1094 = vmatprep.subr.mxu0 0.0
          %1095 = vmatpush1.msra.mxu0 0.0
          %1096 = vmatprep.subr.mxu0 0.0
          %1097 = vmatpush1.msra.mxu0 0.0
          %1098 = vmatprep.subr.mxu0 0.0
          %1099 = vmatpush1.msra.mxu0 0.0
          %1100 = vmatprep.subr.mxu0 0.0
          %1101 = vmatpush1.msra.mxu0 0.0
          %1102 = vmatprep.subr.mxu0 0.0
          %1103 = vmatpush1.msra.mxu0 0.0
          %1104 = vmatprep.subr.mxu0 0.0
          %1105 = vmatpush1.msra.mxu0 0.0
          %1106 = vmatprep.mubr.f32.mxu0 0.0
          %v1107 = vand.u32 %v1036, 4294901760
          %v1108 = vsub.f32 %v1036, %v1107
          %v1109 = vand.u32 %v1108, 4294901760
          %v1110 = vsub.f32 %v1108, %v1109
          %v1111 = vand.u32 %v1110, 4294901760
          %1112 = vmatmul.mubr.f32.gmra.mrb[0].mxu0 %v1111
          %v1113 = vpop.f32.mrb[0].mxu0
          %v1114 = vadd.f32 %v1032, %v1113
          %v1115 = vpop.f32.mrb[0].mxu0
          %1116 = vdwg.mxu0
          %1117 = vmatprep.subr.mxu0 0.0
          %v1118 = vand.u32 %v1039, 4294901760
          %v1119 = vsub.f32 %v1039, %v1118
          %v1120 = vand.u32 %v1119, 4294901760
          %v1121 = vsub.f32 %v1119, %v1120
          %v1122 = vand.u32 %v1121, 4294901760
          %1123 = vmatpush1.msra.mxu0 %v1122
          %1124 = vmatprep.subr.mxu0 0.0
          %1125 = vmatpush1.msra.mxu0 0.0
          %1126 = vmatprep.subr.mxu0 0.0
          %1127 = vmatpush1.msra.mxu0 0.0
          %1128 = vmatprep.subr.mxu0 0.0
          %1129 = vmatpush1.msra.mxu0 0.0
          %1130 = vmatprep.subr.mxu0 0.0
          %1131 = vmatpush1.msra.mxu0 0.0
          %1132 = vmatprep.subr.mxu0 0.0
          %1133 = vmatpush1.msra.mxu0 0.0
          %1134 = vmatprep.subr.mxu0 0.0
          %1135 = vmatpush1.msra.mxu0 0.0
          %1136 = vmatprep.subr.mxu0 0.0
          %1137 = vmatpush1.msra.mxu0 0.0
          %1138 = vmatprep.subr.mxu0 0.0
          %1139 = vmatpush1.msra.mxu0 0.0
          %1140 = vmatprep.subr.mxu0 0.0
          %1141 = vmatpush1.msra.mxu0 0.0
          %1142 = vmatprep.subr.mxu0 0.0
          %1143 = vmatpush1.msra.mxu0 0.0
          %1144 = vmatprep.subr.mxu0 0.0
          %1145 = vmatpush1.msra.mxu0 0.0
          %1146 = vmatprep.subr.mxu0 0.0
          %1147 = vmatpush1.msra.mxu0 0.0
          %1148 = vmatprep.subr.mxu0 0.0
          %1149 = vmatpush1.msra.mxu0 0.0
          %1150 = vmatprep.subr.mxu0 0.0
          %1151 = vmatpush1.msra.mxu0 0.0
          %1152 = vmatprep.subr.mxu0 0.0
          %1153 = vmatpush1.msra.mxu0 0.0
          %1154 = vmatprep.subr.mxu0 0.0
          %1155 = vmatpush1.msra.mxu0 0.0
          %1156 = vmatprep.subr.mxu0 0.0
          %1157 = vmatpush1.msra.mxu0 0.0
          %1158 = vmatprep.subr.mxu0 0.0
          %1159 = vmatpush1.msra.mxu0 0.0
          %1160 = vmatprep.subr.mxu0 0.0
          %1161 = vmatpush1.msra.mxu0 0.0
          %1162 = vmatprep.subr.mxu0 0.0
          %1163 = vmatpush1.msra.mxu0 0.0
          %1164 = vmatprep.subr.mxu0 0.0
          %1165 = vmatpush1.msra.mxu0 0.0
          %1166 = vmatprep.subr.mxu0 0.0
          %1167 = vmatpush1.msra.mxu0 0.0
          %1168 = vmatprep.subr.mxu0 0.0
          %1169 = vmatpush1.msra.mxu0 0.0
          %1170 = vmatprep.subr.mxu0 0.0
          %1171 = vmatpush1.msra.mxu0 0.0
          %1172 = vmatprep.subr.mxu0 0.0
          %1173 = vmatpush1.msra.mxu0 0.0
          %1174 = vmatprep.subr.mxu0 0.0
          %1175 = vmatpush1.msra.mxu0 0.0
          %1176 = vmatprep.subr.mxu0 0.0
          %1177 = vmatpush1.msra.mxu0 0.0
          %1178 = vmatprep.subr.mxu0 0.0
          %1179 = vmatpush1.msra.mxu0 0.0
          %1180 = vmatprep.subr.mxu0 0.0
          %1181 = vmatpush1.msra.mxu0 0.0
          %1182 = vmatprep.subr.mxu0 0.0
          %1183 = vmatpush1.msra.mxu0 0.0
          %1184 = vmatprep.subr.mxu0 0.0
          %1185 = vmatpush1.msra.mxu0 0.0
          %1186 = vmatprep.mubr.f32.mxu0 0.0
          %v1187 = vand.u32 %v1036, 4294901760
          %1188 = vmatmul.mubr.f32.gmra.mrb[0].mxu0 %v1187
          %v1189 = vpop.f32.mrb[0].mxu0
          %v1190 = vadd.f32 %v1114, %v1189
          %v1191 = vpop.f32.mrb[0].mxu0
          %1192 = vdwg.mxu0
          %1193 = vmatprep.subr.mxu0 0.0
          %v1194 = vand.u32 %v1039, 4294901760
          %v1195 = vsub.f32 %v1039, %v1194
          %1196 = vmatpush1.msra.mxu0 %v1195
          %1197 = vmatprep.subr.mxu0 0.0
          %1198 = vmatpush1.msra.mxu0 0.0
          %1199 = vmatprep.subr.mxu0 0.0
          %1200 = vmatpush1.msra.mxu0 0.0
          %1201 = vmatprep.subr.mxu0 0.0
          %1202 = vmatpush1.msra.mxu0 0.0
          %1203 = vmatprep.subr.mxu0 0.0
          %1204 = vmatpush1.msra.mxu0 0.0
          %1205 = vmatprep.subr.mxu0 0.0
          %1206 = vmatpush1.msra.mxu0 0.0
          %1207 = vmatprep.subr.mxu0 0.0
          %1208 = vmatpush1.msra.mxu0 0.0
          %1209 = vmatprep.subr.mxu0 0.0
          %1210 = vmatpush1.msra.mxu0 0.0
          %1211 = vmatprep.subr.mxu0 0.0
          %1212 = vmatpush1.msra.mxu0 0.0
          %1213 = vmatprep.subr.mxu0 0.0
          %1214 = vmatpush1.msra.mxu0 0.0
          %1215 = vmatprep.subr.mxu0 0.0
          %1216 = vmatpush1.msra.mxu0 0.0
          %1217 = vmatprep.subr.mxu0 0.0
          %1218 = vmatpush1.msra.mxu0 0.0
          %1219 = vmatprep.subr.mxu0 0.0
          %1220 = vmatpush1.msra.mxu0 0.0
          %1221 = vmatprep.subr.mxu0 0.0
          %1222 = vmatpush1.msra.mxu0 0.0
          %1223 = vmatprep.subr.mxu0 0.0
          %1224 = vmatpush1.msra.mxu0 0.0
          %1225 = vmatprep.subr.mxu0 0.0
          %1226 = vmatpush1.msra.mxu0 0.0
          %1227 = vmatprep.subr.mxu0 0.0
          %1228 = vmatpush1.msra.mxu0 0.0
          %1229 = vmatprep.subr.mxu0 0.0
          %1230 = vmatpush1.msra.mxu0 0.0
          %1231 = vmatprep.subr.mxu0 0.0
          %1232 = vmatpush1.msra.mxu0 0.0
          %1233 = vmatprep.subr.mxu0 0.0
          %1234 = vmatpush1.msra.mxu0 0.0
          %1235 = vmatprep.subr.mxu0 0.0
          %1236 = vmatpush1.msra.mxu0 0.0
          %1237 = vmatprep.subr.mxu0 0.0
          %1238 = vmatpush1.msra.mxu0 0.0
          %1239 = vmatprep.subr.mxu0 0.0
          %1240 = vmatpush1.msra.mxu0 0.0
          %1241 = vmatprep.subr.mxu0 0.0
          %1242 = vmatpush1.msra.mxu0 0.0
          %1243 = vmatprep.subr.mxu0 0.0
          %1244 = vmatpush1.msra.mxu0 0.0
          %1245 = vmatprep.subr.mxu0 0.0
          %1246 = vmatpush1.msra.mxu0 0.0
          %1247 = vmatprep.subr.mxu0 0.0
          %1248 = vmatpush1.msra.mxu0 0.0
          %1249 = vmatprep.subr.mxu0 0.0
          %1250 = vmatpush1.msra.mxu0 0.0
          %1251 = vmatprep.subr.mxu0 0.0
          %1252 = vmatpush1.msra.mxu0 0.0
          %1253 = vmatprep.subr.mxu0 0.0
          %1254 = vmatpush1.msra.mxu0 0.0
          %1255 = vmatprep.subr.mxu0 0.0
          %1256 = vmatpush1.msra.mxu0 0.0
          %1257 = vmatprep.subr.mxu0 0.0
          %1258 = vmatpush1.msra.mxu0 0.0
          %1259 = vmatprep.mubr.f32.mxu0 0.0
          %v1260 = vand.u32 %v1036, 4294901760
          %v1261 = vsub.f32 %v1036, %v1260
          %1262 = vmatmul.mubr.f32.gmra.mrb[0].mxu0 %v1261
          %v1263 = vpop.f32.mrb[0].mxu0
          %v1264 = vadd.f32 %v1190, %v1263
          %v1265 = vpop.f32.mrb[0].mxu0
          %1266 = vdwg.mxu0
          %1267 = vmatprep.subr.mxu0 0.0
          %v1268 = vand.u32 %v1039, 4294901760
          %1269 = vmatpush1.msra.mxu0 %v1268
          %1270 = vmatprep.subr.mxu0 0.0
          %1271 = vmatpush1.msra.mxu0 0.0
          %1272 = vmatprep.subr.mxu0 0.0
          %1273 = vmatpush1.msra.mxu0 0.0
          %1274 = vmatprep.subr.mxu0 0.0
          %1275 = vmatpush1.msra.mxu0 0.0
          %1276 = vmatprep.subr.mxu0 0.0
          %1277 = vmatpush1.msra.mxu0 0.0
          %1278 = vmatprep.subr.mxu0 0.0
          %1279 = vmatpush1.msra.mxu0 0.0
          %1280 = vmatprep.subr.mxu0 0.0
          %1281 = vmatpush1.msra.mxu0 0.0
          %1282 = vmatprep.subr.mxu0 0.0
          %1283 = vmatpush1.msra.mxu0 0.0
          %1284 = vmatprep.subr.mxu0 0.0
          %1285 = vmatpush1.msra.mxu0 0.0
          %1286 = vmatprep.subr.mxu0 0.0
          %1287 = vmatpush1.msra.mxu0 0.0
          %1288 = vmatprep.subr.mxu0 0.0
          %1289 = vmatpush1.msra.mxu0 0.0
          %1290 = vmatprep.subr.mxu0 0.0
          %1291 = vmatpush1.msra.mxu0 0.0
          %1292 = vmatprep.subr.mxu0 0.0
          %1293 = vmatpush1.msra.mxu0 0.0
          %1294 = vmatprep.subr.mxu0 0.0
          %1295 = vmatpush1.msra.mxu0 0.0
          %1296 = vmatprep.subr.mxu0 0.0
          %1297 = vmatpush1.msra.mxu0 0.0
          %1298 = vmatprep.subr.mxu0 0.0
          %1299 = vmatpush1.msra.mxu0 0.0
          %1300 = vmatprep.subr.mxu0 0.0
          %1301 = vmatpush1.msra.mxu0 0.0
          %1302 = vmatprep.subr.mxu0 0.0
          %1303 = vmatpush1.msra.mxu0 0.0
          %1304 = vmatprep.subr.mxu0 0.0
          %1305 = vmatpush1.msra.mxu0 0.0
          %1306 = vmatprep.subr.mxu0 0.0
          %1307 = vmatpush1.msra.mxu0 0.0
          %1308 = vmatprep.subr.mxu0 0.0
          %1309 = vmatpush1.msra.mxu0 0.0
          %1310 = vmatprep.subr.mxu0 0.0
          %1311 = vmatpush1.msra.mxu0 0.0
          %1312 = vmatprep.subr.mxu0 0.0
          %1313 = vmatpush1.msra.mxu0 0.0
          %1314 = vmatprep.subr.mxu0 0.0
          %1315 = vmatpush1.msra.mxu0 0.0
          %1316 = vmatprep.subr.mxu0 0.0
          %1317 = vmatpush1.msra.mxu0 0.0
          %1318 = vmatprep.subr.mxu0 0.0
          %1319 = vmatpush1.msra.mxu0 0.0
          %1320 = vmatprep.subr.mxu0 0.0
          %1321 = vmatpush1.msra.mxu0 0.0
          %1322 = vmatprep.subr.mxu0 0.0
          %1323 = vmatpush1.msra.mxu0 0.0
          %1324 = vmatprep.subr.mxu0 0.0
          %1325 = vmatpush1.msra.mxu0 0.0
          %1326 = vmatprep.subr.mxu0 0.0
          %1327 = vmatpush1.msra.mxu0 0.0
          %1328 = vmatprep.subr.mxu0 0.0
          %1329 = vmatpush1.msra.mxu0 0.0
          %1330 = vmatprep.subr.mxu0 0.0
          %1331 = vmatpush1.msra.mxu0 0.0
          %1332 = vmatprep.mubr.f32.mxu0 0.0
          %v1333 = vand.u32 %v1036, 4294901760
          %v1334 = vsub.f32 %v1036, %v1333
          %v1335 = vand.u32 %v1334, 4294901760
          %1336 = vmatmul.mubr.f32.gmra.mrb[0].mxu0 %v1335
          %v1337 = vpop.f32.mrb[0].mxu0
          %v1338 = vadd.f32 %v1264, %v1337
          %v1339 = vpop.f32.mrb[0].mxu0
          %1340 = vdwg.mxu0
          %1341 = vmatprep.subr.mxu0 0.0
          %v1342 = vand.u32 %v1039, 4294901760
          %v1343 = vsub.f32 %v1039, %v1342
          %v1344 = vand.u32 %v1343, 4294901760
          %1345 = vmatpush1.msra.mxu0 %v1344
          %1346 = vmatprep.subr.mxu0 0.0
          %1347 = vmatpush1.msra.mxu0 0.0
          %1348 = vmatprep.subr.mxu0 0.0
          %1349 = vmatpush1.msra.mxu0 0.0
          %1350 = vmatprep.subr.mxu0 0.0
          %1351 = vmatpush1.msra.mxu0 0.0
          %1352 = vmatprep.subr.mxu0 0.0
          %1353 = vmatpush1.msra.mxu0 0.0
          %1354 = vmatprep.subr.mxu0 0.0
          %1355 = vmatpush1.msra.mxu0 0.0
          %1356 = vmatprep.subr.mxu0 0.0
          %1357 = vmatpush1.msra.mxu0 0.0
          %1358 = vmatprep.subr.mxu0 0.0
          %1359 = vmatpush1.msra.mxu0 0.0
          %1360 = vmatprep.subr.mxu0 0.0
          %1361 = vmatpush1.msra.mxu0 0.0
          %1362 = vmatprep.subr.mxu0 0.0
          %1363 = vmatpush1.msra.mxu0 0.0
          %1364 = vmatprep.subr.mxu0 0.0
          %1365 = vmatpush1.msra.mxu0 0.0
          %1366 = vmatprep.subr.mxu0 0.0
          %1367 = vmatpush1.msra.mxu0 0.0
          %1368 = vmatprep.subr.mxu0 0.0
          %1369 = vmatpush1.msra.mxu0 0.0
          %1370 = vmatprep.subr.mxu0 0.0
          %1371 = vmatpush1.msra.mxu0 0.0
          %1372 = vmatprep.subr.mxu0 0.0
          %1373 = vmatpush1.msra.mxu0 0.0
          %1374 = vmatprep.subr.mxu0 0.0
          %1375 = vmatpush1.msra.mxu0 0.0
          %1376 = vmatprep.subr.mxu0 0.0
          %1377 = vmatpush1.msra.mxu0 0.0
          %1378 = vmatprep.subr.mxu0 0.0
          %1379 = vmatpush1.msra.mxu0 0.0
          %1380 = vmatprep.subr.mxu0 0.0
          %1381 = vmatpush1.msra.mxu0 0.0
          %1382 = vmatprep.subr.mxu0 0.0
          %1383 = vmatpush1.msra.mxu0 0.0
          %1384 = vmatprep.subr.mxu0 0.0
          %1385 = vmatpush1.msra.mxu0 0.0
          %1386 = vmatprep.subr.mxu0 0.0
          %1387 = vmatpush1.msra.mxu0 0.0
          %1388 = vmatprep.subr.mxu0 0.0
          %1389 = vmatpush1.msra.mxu0 0.0
          %1390 = vmatprep.subr.mxu0 0.0
          %1391 = vmatpush1.msra.mxu0 0.0
          %1392 = vmatprep.subr.mxu0 0.0
          %1393 = vmatpush1.msra.mxu0 0.0
          %1394 = vmatprep.subr.mxu0 0.0
          %1395 = vmatpush1.msra.mxu0 0.0
          %1396 = vmatprep.subr.mxu0 0.0
          %1397 = vmatpush1.msra.mxu0 0.0
          %1398 = vmatprep.subr.mxu0 0.0
          %1399 = vmatpush1.msra.mxu0 0.0
          %1400 = vmatprep.subr.mxu0 0.0
          %1401 = vmatpush1.msra.mxu0 0.0
          %1402 = vmatprep.subr.mxu0 0.0
          %1403 = vmatpush1.msra.mxu0 0.0
          %1404 = vmatprep.subr.mxu0 0.0
          %1405 = vmatpush1.msra.mxu0 0.0
          %1406 = vmatprep.subr.mxu0 0.0
          %1407 = vmatpush1.msra.mxu0 0.0
          %1408 = vmatprep.mubr.f32.mxu0 0.0
          %v1409 = vand.u32 %v1036, 4294901760
          %1410 = vmatmul.mubr.f32.gmra.mrb[0].mxu0 %v1409
          %v1411 = vpop.f32.mrb[0].mxu0
          %v1412 = vadd.f32 %v1338, %v1411
          %v1413 = vpop.f32.mrb[0].mxu0
          %1414 = vdwg.mxu0
          %1415 = vmatprep.subr.mxu0 0.0
          %v1416 = vand.u32 %v1039, 4294901760
          %1417 = vmatpush1.msra.mxu0 %v1416
          %1418 = vmatprep.subr.mxu0 0.0
          %1419 = vmatpush1.msra.mxu0 0.0
          %1420 = vmatprep.subr.mxu0 0.0
          %1421 = vmatpush1.msra.mxu0 0.0
          %1422 = vmatprep.subr.mxu0 0.0
          %1423 = vmatpush1.msra.mxu0 0.0
          %1424 = vmatprep.subr.mxu0 0.0
          %1425 = vmatpush1.msra.mxu0 0.0
          %1426 = vmatprep.subr.mxu0 0.0
          %1427 = vmatpush1.msra.mxu0 0.0
          %1428 = vmatprep.subr.mxu0 0.0
          %1429 = vmatpush1.msra.mxu0 0.0
          %1430 = vmatprep.subr.mxu0 0.0
          %1431 = vmatpush1.msra.mxu0 0.0
          %1432 = vmatprep.subr.mxu0 0.0
          %1433 = vmatpush1.msra.mxu0 0.0
          %1434 = vmatprep.subr.mxu0 0.0
          %1435 = vmatpush1.msra.mxu0 0.0
          %1436 = vmatprep.subr.mxu0 0.0
          %1437 = vmatpush1.msra.mxu0 0.0
          %1438 = vmatprep.subr.mxu0 0.0
          %1439 = vmatpush1.msra.mxu0 0.0
          %1440 = vmatprep.subr.mxu0 0.0
          %1441 = vmatpush1.msra.mxu0 0.0
          %1442 = vmatprep.subr.mxu0 0.0
          %1443 = vmatpush1.msra.mxu0 0.0
          %1444 = vmatprep.subr.mxu0 0.0
          %1445 = vmatpush1.msra.mxu0 0.0
          %1446 = vmatprep.subr.mxu0 0.0
          %1447 = vmatpush1.msra.mxu0 0.0
          %1448 = vmatprep.subr.mxu0 0.0
          %1449 = vmatpush1.msra.mxu0 0.0
          %1450 = vmatprep.subr.mxu0 0.0
          %1451 = vmatpush1.msra.mxu0 0.0
          %1452 = vmatprep.subr.mxu0 0.0
          %1453 = vmatpush1.msra.mxu0 0.0
          %1454 = vmatprep.subr.mxu0 0.0
          %1455 = vmatpush1.msra.mxu0 0.0
          %1456 = vmatprep.subr.mxu0 0.0
          %1457 = vmatpush1.msra.mxu0 0.0
          %1458 = vmatprep.subr.mxu0 0.0
          %1459 = vmatpush1.msra.mxu0 0.0
          %1460 = vmatprep.subr.mxu0 0.0
          %1461 = vmatpush1.msra.mxu0 0.0
          %1462 = vmatprep.subr.mxu0 0.0
          %1463 = vmatpush1.msra.mxu0 0.0
          %1464 = vmatprep.subr.mxu0 0.0
          %1465 = vmatpush1.msra.mxu0 0.0
          %1466 = vmatprep.subr.mxu0 0.0
          %1467 = vmatpush1.msra.mxu0 0.0
          %1468 = vmatprep.subr.mxu0 0.0
          %1469 = vmatpush1.msra.mxu0 0.0
          %1470 = vmatprep.subr.mxu0 0.0
          %1471 = vmatpush1.msra.mxu0 0.0
          %1472 = vmatprep.subr.mxu0 0.0
          %1473 = vmatpush1.msra.mxu0 0.0
          %1474 = vmatprep.subr.mxu0 0.0
          %1475 = vmatpush1.msra.mxu0 0.0
          %1476 = vmatprep.subr.mxu0 0.0
          %1477 = vmatpush1.msra.mxu0 0.0
          %1478 = vmatprep.subr.mxu0 0.0
          %1479 = vmatpush1.msra.mxu0 0.0
          %1480 = vmatprep.mubr.f32.mxu0 0.0
          %v1481 = vand.u32 %v1036, 4294901760
          %1482 = vmatmul.mubr.f32.gmra.mrb[0].mxu0 %v1481
          %v1483 = vpop.f32.mrb[0].mxu0
          %v1484 = vadd.f32 %v1412, %v1483
          %v1485 = vpop.f32.mrb[0].mxu0
          %1486 = vdwg.mxu0
          %v1487 = vxor.u32 %v1484, 2147483648
          %v1488 = vmul.f32 %v1487, 1.442695
          %v1489 = vpow.pop %v1488
          %v1490 = vadd.f32 %v1489, 1.0
          %v1491 = vrcp.pop %v1490
          %v1492 = vmul.f32 1.0, %v1491
          %vm1493 = vcmask 11264
          %1494 = vst.msk [vmem:[%s457] sm:$0xf] %vm1493, %v1492
        $region72: #{tpu_custom_call.1} parent=51 // pred_fallthru
          _
        %p1495 = scmp.lt.s32.totalorder %s29, 1
        %s1496 = scalar_select %p1495, %s29, 1
        %s1497 = smul.addr %s1496, 4
        %s1498 = scalar_lea.vmem %s8, %s1497
        // Predicated region
        $region73: #{tpu_custom_call.1} parent=51 // pred_check
          %p1499 = pneg %p251
        $region74: #{tpu_custom_call.1} parent=51 // pred_check_branch
          %1501 = sbr.rel (%p1499) target = $region76
        $region75: #{tpu_custom_call.1} parent=51 // pred_region
          _
        $region76: #{tpu_custom_call.1} parent=51 // pred_fallthru
          _
      $region52: #{tpu_custom_call.1} parent=5 // pred_fallthru
        _
      %p1502 = scmp.le.s32.totalorder 2, %s20
      // Predicated region
      $region77: #{tpu_custom_call.1} parent=5 // pred_check
        %p1503 = pneg %p1502
      $region78: #{tpu_custom_call.1} parent=5 // pred_check_branch
        %1505 = sbr.rel (%p1503) target = $region80
      $region79: #{tpu_custom_call.1} parent=5 // pred_region
        %s1506 = ssub.s32 %s20, 2
        // Predicated region
        $region81: #{tpu_custom_call.1} parent=79 // pred_check
          %p1507 = pneg %p257
        $region82: #{tpu_custom_call.1} parent=79 // pred_check_branch
          %1509 = sbr.rel (%p1507) target = $region84
        $region83: #{tpu_custom_call.1} parent=79 // pred_region
          %p1510 = scmp.lt.s32.totalorder %s31, 1
          %s1511 = scalar_select %p1510, %s31, 1
          %s1512 = smul.addr %s1511, 4
          %s1513 = scalar_lea.vmem %s8, %s1512
        $region84: #{tpu_custom_call.1} parent=79 // pred_fallthru
          _
      $region80: #{tpu_custom_call.1} parent=5 // pred_fallthru
        _
    $region6: #{tpu_custom_call.1} parent=1 // loop_footer
      %s24 = sadd.s32 1, %s20
    $region7: #{tpu_custom_call.1} parent=1 // loop_footer_branch
      %19 = sbr.rel target = $region3
    $region8: #{tpu_custom_call.1} parent=1 // loop_exit
      _
    %1514 = vsyncpa [#allocation5], 1
    %s1515 = scalar_lea.sflag [#allocation5], 1
    %1516 = vsyncpa %s1515, 1
    %1517 = vsyncpa [#allocation7], 1
    %s1518 = scalar_lea.sflag [#allocation7], 1
    %1519 = vsyncpa %s1518, 1

</llo_original>
